<compile_context>
chip_gen: v7x
topology: tpu7x:2x2x1
jax: 0.10.0
libtpu: 0.0.40
codegen_flags: <defaults>
</compile_context>

<pallas_src>
import numpy as np
import jax
import jax.numpy as jnp
from jax.experimental import pallas as pl
from jax.experimental.pallas import tpu as pltpu
from scipy.optimize import linear_sum_assignment

# ---------------- configuration (mirrors HungarianMatcher.__init__) -------------
MATCH_WEIGHTS = {
    "class_weight": 2.0,
    "pt_coord_weight": 5.0,
    "pt_confidence_weight": 1.0,  # computed in forward but unused in C (as in reference)
}
ROAD_ELEMENT_CLS = ["bg", "lane", "curb", "crosswalk"]   # len == NUM_CLASSES
LABEL_BG_WEIGHT = 0.25                                   # focal-loss alpha (background)
FOCAL_GAMMA = 2.0
# TODO(synk): FocalLoss class is not given in the snippet; a standard multi-class
# focal loss (alpha on class 0 / background, 1-alpha elsewhere, gamma=2, no
# reduction) is assumed.

NUM_QUERIES = 16      # Q
NUM_GT = 8            # G
NUM_POINTS = 16       # P
NUM_CLASSES = len(ROAD_ELEMENT_CLS)   # C

Q, G, P, C = NUM_QUERIES, NUM_GT, NUM_POINTS, NUM_CLASSES
TWO_P = 2 * P

# ---------------- packed-slab layout (one lane-dense f32 slab per instance) -----
# per-query rows [0:Q), lane layout:
#   [0            : 2P*G)          pred coords, d-major, each value repeated G times
#   [CONF_OFF     : CONF_OFF+P*G)  pred confidence, p-major, each value repeated G times
#   [CLS_OFF      : CLS_OFF+C)     class logits
# target rows:
#   row Q   lanes [0:2P*G)  target coords, d-major flatten: lane d*G+g = tgt[g, d]
#   row Q+1 lanes [0:P*G)   target padding mask, p-major flatten: lane p*G+g = mask[g, p]
#   row Q+2 lanes [0:G)     target class labels (stored as f32)
COORD_LANES = TWO_P * G            # 256
CONF_LANES = P * G                 # 128
CONF_OFF = COORD_LANES             # 256
CLS_OFF = CONF_OFF + CONF_LANES    # 384
SLAB_LANES = 512                   # multiple of 128 (lane-dense DMA)
SLAB_ROWS = Q + 8                  # 3 target rows + pad to a multiple of 8 sublanes
TGT_COORD_ROW = Q
TGT_MASK_ROW = Q + 1
TGT_CLS_ROW = Q + 2

OUT_LANES = 128                    # output block is 128 lanes wide (dense writeback)
BB = 4                             # matcher instances processed per grid step


def _halve(x):
    """Pairwise lane fold: adds lane j to lane j + W/2 (exact f32 segment reduction
    over the g-minor packed layout; after log2(W/G) folds, lane g holds the sum)."""
    w = x.shape[-1] // 2
    return x[:, :w] + x[:, w:]


# ------------------------------- Pallas kernel ----------------------------------
def _matcher_cost_kernel(in_ref, out_ref):
    # in_ref : (BB, SLAB_ROWS, SLAB_LANES)   packed predictions + targets
    # out_ref: (BB, Q, OUT_LANES)            lanes [0,G) = C, lanes [G,2G) = conf cost
    w_class = MATCH_WEIGHTS["class_weight"]
    w_coord = MATCH_WEIGHTS["pt_coord_weight"]

    for b in range(BB):  # static unroll: amortizes per-step overhead over BB items
        # ---- loads: static slices of the single lane-dense input tile ----
        coord_rep = in_ref[b, 0:Q, 0:COORD_LANES]                               # (Q, 256)
        conf_rep = in_ref[b, 0:Q, CONF_OFF:CONF_OFF + CONF_LANES]               # (Q, 128)
        logits = in_ref[b, 0:Q, CLS_OFF:CLS_OFF + C]                            # (Q, C)
        tgt_coord = in_ref[b, TGT_COORD_ROW:TGT_COORD_ROW + 1, 0:COORD_LANES]   # (1, 256)
        tgt_mask = in_ref[b, TGT_MASK_ROW:TGT_MASK_ROW + 1, 0:CONF_LANES]       # (1, 128)
        tgt_cls = in_ref[b, TGT_CLS_ROW:TGT_CLS_ROW + 1, 0:G]                   # (1, G)

        # ---- focal-loss class cost (Q, G) ----
        m = jnp.max(logits, axis=-1, keepdims=True)
        z = logits - m
        lse = jnp.log(jnp.sum(jnp.exp(z), axis=-1, keepdims=True))
        log_p = z - lse                                                         # (Q, C)
        # gather log p_t with C unrolled VPU selects (no MXU round trip / truncation)
        is_bg = tgt_cls == 0.0
        logpt = jnp.where(is_bg, log_p[:, 0:1], 0.0)                            # (Q, G)
        for cls_id in range(1, C):
            logpt = logpt + jnp.where(tgt_cls == float(cls_id),
                                      log_p[:, cls_id:cls_id + 1], 0.0)
        pt = jnp.exp(logpt)
        alpha = jnp.where(is_bg, LABEL_BG_WEIGHT, 1.0 - LABEL_BG_WEIGHT)        # (1, G)
        one_minus_pt = 1.0 - pt
        cost_class = -alpha * one_minus_pt * one_minus_pt * logpt               # gamma == 2

        # ---- point-confidence L1 cost: sum_p |mask - conf|  (computed but not in C,
        #      exactly as in the reference module) ----
        # lane-packed (p-major x G) layout -> full 128-lane utilization; 4 exact folds.
        conf_term = jnp.abs(tgt_mask - conf_rep)                                # (Q, 128)
        conf_cost = _halve(_halve(_halve(_halve(conf_term))))                   # (Q, G)

        # ---- masked point-coordinate cost ----
        # lane-packed (d-major x G) layout (Q, 256) -> 100% lane utilization; 5 folds.
        diff = coord_rep - tgt_coord                                            # (Q, 256)
        cmask = diff < 1.0
        filt = jnp.where(cmask, jnp.abs(diff), 0.0)
        cnt = cmask.astype(jnp.float32)
        for _ in range(5):                                                      # 256 -> 8
            filt = _halve(filt)
            cnt = _halve(cnt)
        # reference divides by the raw count (inf/nan when 0); clamp to 1 so the
        # Hungarian solve never sees non-finite costs (identical whenever count > 0).
        coord_cost = filt / jnp.maximum(cnt, 1.0)                               # (Q, G)

        cost = w_class * cost_class + w_coord * coord_cost                      # (Q, G)

        # output block is 128 lanes wide (dense HBM layout / single writeback DMA);
        # the two G-lane stores below are the only sub-lane-width stores left.
        out_ref[b, :, 0:G] = cost
        out_ref[b, :, G:2 * G] = conf_cost


# --------------------------- host-side packing + wrapper -------------------------
def _pack_inputs(pred_class, pred_pt_confidence, pred_pt_coord,
                 tgt_labels, tgt_points_padding_mask, tgt_points):
    """Pack all six inputs into one lane-dense f32 slab per instance (1 DMA/block)."""
    B = pred_class.shape[0]
    f32 = jnp.float32

    out_coord = pred_pt_coord.reshape(B, Q, TWO_P).astype(f32)                 # (B,Q,2P)
    coord_rep = jnp.broadcast_to(out_coord[..., None],
                                 (B, Q, TWO_P, G)).reshape(B, Q, COORD_LANES)
    conf = pred_pt_confidence.astype(f32)                                      # (B,Q,P)
    conf_rep = jnp.broadcast_to(conf[..., None],
                                (B, Q, P, G)).reshape(B, Q, CONF_LANES)
    logits = pred_class.astype(f32)                                            # (B,Q,C)

    pred_rows = jnp.zeros((B, Q, SLAB_LANES), f32)
    pred_rows = pred_rows.at[:, :, 0:COORD_LANES].set(coord_rep)
    pred_rows = pred_rows.at[:, :, CONF_OFF:CONF_OFF + CONF_LANES].set(conf_rep)
    pred_rows = pred_rows.at[:, :, CLS_OFF:CLS_OFF + C].set(logits)

    tgt_coord = tgt_points[:, :, :, 0:2].reshape(B, G, TWO_P).astype(f32)      # (B,G,2P)
    tgt_coord_pk = jnp.transpose(tgt_coord, (0, 2, 1)).reshape(B, COORD_LANES)
    tgt_mask_pk = jnp.transpose(tgt_points_padding_mask.astype(f32),
                                (0, 2, 1)).reshape(B, CONF_LANES)
    tgt_cls = tgt_labels.reshape(B, G).astype(f32)

    tgt_rows = jnp.zeros((B, SLAB_ROWS - Q, SLAB_LANES), f32)
    tgt_rows = tgt_rows.at[:, 0, 0:COORD_LANES].set(tgt_coord_pk)
    tgt_rows = tgt_rows.at[:, 1, 0:CONF_LANES].set(tgt_mask_pk)
    tgt_rows = tgt_rows.at[:, 2, 0:G].set(tgt_cls)

    return jnp.concatenate([pred_rows, tgt_rows], axis=1)                      # (B,24,512)


@jax.jit
def compute_cost_matrices(pred_class, pred_pt_confidence, pred_pt_coord,
                          tgt_labels, tgt_points_padding_mask, tgt_points):
    """Batched (B, Q, G) matching-cost matrices via a single batched Pallas call."""
    slab = _pack_inputs(pred_class, pred_pt_confidence, pred_pt_coord,
                        tgt_labels, tgt_points_padding_mask, tgt_points)
    B = slab.shape[0]
    Bp = ((B + BB - 1) // BB) * BB
    if Bp != B:  # pad the batch to a multiple of BB (all-zero slabs are harmless)
        slab = jnp.pad(slab, ((0, Bp - B), (0, 0), (0, 0)))

    flops_per_item = Q * (6 * COORD_LANES + 3 * CONF_LANES + 12 * G + 8 * C)
    out = pl.pallas_call(
        _matcher_cost_kernel,
        out_shape=jax.ShapeDtypeStruct((Bp, Q, OUT_LANES), jnp.float32),
        grid=(Bp // BB,),
        in_specs=[pl.BlockSpec((BB, SLAB_ROWS, SLAB_LANES), lambda i: (i, 0, 0))],
        out_specs=pl.BlockSpec((BB, Q, OUT_LANES), lambda i: (i, 0, 0)),
        compiler_params=pltpu.CompilerParams(dimension_semantics=("parallel",)),
        cost_estimate=pl.CostEstimate(
            flops=Bp * flops_per_item,
            transcendentals=Bp * Q * (C + G + 1),
            bytes_accessed=Bp * 4 * (SLAB_ROWS * SLAB_LANES + Q * OUT_LANES)),
    )(slab)

    cost = out[:B, :, :G]            # (B, Q, G) matching-cost matrices
    conf_cost = out[:B, :, G:2 * G]  # (B, Q, G) point-confidence cost (unused in C)
    return cost, conf_cost


# ------------------------------ pure-JAX reference ------------------------------
def _reference_single(pred_class, pred_pt_confidence, pred_pt_coord,
                      tgt_labels, tgt_points_padding_mask, tgt_points):
    q = pred_pt_confidence.shape[0]
    g = tgt_points_padding_mask.shape[0]
    out_coord = pred_pt_coord.reshape(q, -1)
    tgt_coord = tgt_points[:, :, 0:2].reshape(g, -1)
    tgt_class = tgt_labels.squeeze(-1)

    logits = jnp.broadcast_to(pred_class[None], (g, q, pred_class.shape[-1]))
    labels = jnp.broadcast_to(tgt_class[:, None], (g, q))
    log_p = jax.nn.log_softmax(logits, axis=-1)
    logpt = jnp.take_along_axis(log_p, labels[..., None], axis=-1)[..., 0]
    pt = jnp.exp(logpt)
    alpha_t = jnp.where(labels == 0, LABEL_BG_WEIGHT, 1.0 - LABEL_BG_WEIGHT)
    cost_class = (-alpha_t * (1.0 - pt) ** FOCAL_GAMMA * logpt).T             # (Q, G)

    conf_cost = jnp.abs(tgt_points_padding_mask[None, :, :]
                        - pred_pt_confidence[:, None, :]).sum(-1)             # (Q, G)

    diff = out_coord[:, None, :] - tgt_coord[None, :, :]
    mask = diff < 1.0                  # note: signed threshold, as in the torch module
    valid = jnp.maximum(mask.sum(-1), 1)   # same clamp as the kernel (degenerate case)
    coord_cost = jnp.abs(jnp.where(mask, diff, 0.0)).sum(-1) / valid
    cmat = (MATCH_WEIGHTS["class_weight"] * cost_class
            + MATCH_WEIGHTS["pt_coord_weight"] * coord_cost)
    return cmat, conf_cost


reference_cost_matrices = jax.vmap(_reference_single)


# ------------------------------------ main ---------------------------------------
if __name__ == "__main__":
    B = 8   # e.g. 2 samples x 4 auxiliary decoder layers, matched in one batched call
    key = jax.random.PRNGKey(0)
    k1, k2, k3, k4, k5, k6 = jax.random.split(key, 6)

    # outputs dict (batched)
    pred_class = jax.random.normal(k1, (B, Q, C), jnp.float32)
    pred_pt_confidence = jax.random.uniform(k2, (B, Q, P), jnp.float32)
    pred_pt_coord = jax.random.uniform(k3, (B, Q, P, 2), jnp.float32)

    # targets (batched)
    tgt_labels = jax.random.randint(k4, (B, G, 1), 0, C, jnp.int32)
    tgt_points_padding_mask = jax.random.bernoulli(k5, 0.7, (B, G, P)).astype(jnp.float32)
    tgt_points = jax.random.uniform(k6, (B, G, P, 3), jnp.float32)

    cost_mat, conf_cost = compute_cost_matrices(
        pred_class, pred_pt_confidence, pred_pt_coord,
        tgt_labels, tgt_points_padding_mask, tgt_points)
    cost_mat = jax.block_until_ready(cost_mat)
    conf_cost = jax.block_until_ready(conf_cost)

    cost_ref, conf_ref = reference_cost_matrices(
        pred_class, pred_pt_confidence, pred_pt_coord,
        tgt_labels, tgt_points_padding_mask, tgt_points)
    np.testing.assert_allclose(np.asarray(cost_mat), np.asarray(cost_ref),
                               rtol=1e-5, atol=1e-5)
    np.testing.assert_allclose(np.asarray(conf_cost), np.asarray(conf_ref),
                               rtol=1e-5, atol=1e-5)

    # Hungarian assignment per instance on host (sequential algorithm, not a TPU kernel).
    cost_np = np.asarray(cost_mat)
    indices = []
    for b in range(B):
        row_ind, col_ind = linear_sum_assignment(cost_np[b])
        indices.append((np.asarray(row_ind, dtype=np.int64),
                        np.asarray(col_ind, dtype=np.int64)))
        assert len(row_ind) == min(Q, G)

    print("KERNEL_OK")
</pallas_src>

<mosaic_0001>
module attributes {stable_mosaic.version = 11 : i64} {
  func.func @_matcher_cost_kernel(%arg0: i32, %arg1: memref<4x24x512xf32, #tpu.memory_space<vmem>>, %arg2: memref<4x16x128xf32, #tpu.memory_space<vmem>>) attributes {dimension_semantics = [#tpu.dimension_semantics<parallel>], iteration_bounds = array<i64: 2>, scalar_prefetch = 0 : i64, scratch_operands = 0 : i64, tpu.core_type = #tpu.core_type<tc>, window_params = [{transform_indices = @transform_0, window_bounds = array<i64: 4, 24, 512>}, {transform_indices = @transform_1, window_bounds = array<i64: 4, 16, 128>}]} {
    %c0 = arith.constant 0 : index
    %c0_0 = arith.constant 0 : index
    %c0_1 = arith.constant 0 : index
    %0 = vector.load %arg1[%c0, %c0_0, %c0_1] : memref<4x24x512xf32, #tpu.memory_space<vmem>>, vector<1x16x256xf32>
    %1 = vector.shape_cast %0 : vector<1x16x256xf32> to vector<16x256xf32>
    %c0_2 = arith.constant 0 : index
    %c0_3 = arith.constant 0 : index
    %c256 = arith.constant 256 : index
    %2 = vector.load %arg1[%c0_2, %c0_3, %c256] : memref<4x24x512xf32, #tpu.memory_space<vmem>>, vector<1x16x128xf32>
    %3 = vector.shape_cast %2 : vector<1x16x128xf32> to vector<16x128xf32>
    %c0_4 = arith.constant 0 : index
    %c0_5 = arith.constant 0 : index
    %c384 = arith.constant 384 : index
    %4 = vector.load %arg1[%c0_4, %c0_5, %c384] : memref<4x24x512xf32, #tpu.memory_space<vmem>>, vector<1x16x4xf32>
    %5 = vector.shape_cast %4 : vector<1x16x4xf32> to vector<16x4xf32>
    %c0_6 = arith.constant 0 : index
    %c16 = arith.constant 16 : index
    %c0_7 = arith.constant 0 : index
    %6 = vector.load %arg1[%c0_6, %c16, %c0_7] : memref<4x24x512xf32, #tpu.memory_space<vmem>>, vector<1x1x256xf32>
    %7 = vector.shape_cast %6 : vector<1x1x256xf32> to vector<1x256xf32>
    %c0_8 = arith.constant 0 : index
    %c17 = arith.constant 17 : index
    %c0_9 = arith.constant 0 : index
    %8 = vector.load %arg1[%c0_8, %c17, %c0_9] : memref<4x24x512xf32, #tpu.memory_space<vmem>>, vector<1x1x128xf32>
    %9 = vector.shape_cast %8 : vector<1x1x128xf32> to vector<1x128xf32>
    %c0_10 = arith.constant 0 : index
    %c18 = arith.constant 18 : index
    %c0_11 = arith.constant 0 : index
    %10 = vector.load %arg1[%c0_10, %c18, %c0_11] : memref<4x24x512xf32, #tpu.memory_space<vmem>>, vector<1x1x8xf32>
    %11 = vector.shape_cast %10 : vector<1x1x8xf32> to vector<1x8xf32>
    %cst = arith.constant dense<0xFF800000> : vector<16xf32>
    %12 = vector.multi_reduction <maximumf>, %5, %cst [1] : vector<16x4xf32> to vector<16xf32>
    %13 = vector.shape_cast %12 : vector<16xf32> to vector<16x1xf32>
    %14 = vector.broadcast %13 : vector<16x1xf32> to vector<16x4xf32>
    %15 = arith.subf %5, %14 : vector<16x4xf32>
    %16 = math.exp %15 : vector<16x4xf32>
    %cst_12 = arith.constant dense<0.000000e+00> : vector<16xf32>
    %17 = vector.multi_reduction <add>, %16, %cst_12 [1] : vector<16x4xf32> to vector<16xf32>
    %18 = vector.shape_cast %17 : vector<16xf32> to vector<16x1xf32>
    %19 = math.log %18 : vector<16x1xf32>
    %20 = vector.broadcast %19 : vector<16x1xf32> to vector<16x4xf32>
    %21 = arith.subf %15, %20 : vector<16x4xf32>
    %cst_13 = arith.constant 0.000000e+00 : f32
    %22 = vector.broadcast %cst_13 : f32 to vector<1x8xf32>
    %23 = arith.cmpf oeq, %11, %22 : vector<1x8xf32>
    %24 = vector.extract_strided_slice %21 {offsets = [0, 0], sizes = [16, 1], strides = [1, 1]} : vector<16x4xf32> to vector<16x1xf32>
    %cst_14 = arith.constant 0.000000e+00 : f32
    %25 = vector.shape_cast %23 : vector<1x8xi1> to vector<1x8xi1>
    %26 = vector.broadcast %25 : vector<1x8xi1> to vector<16x8xi1>
    %27 = vector.shape_cast %24 : vector<16x1xf32> to vector<16x1xf32>
    %28 = vector.broadcast %27 : vector<16x1xf32> to vector<16x8xf32>
    %29 = vector.broadcast %cst_14 : f32 to vector<16x8xf32>
    %30 = arith.select %26, %28, %29 : vector<16x8xi1>, vector<16x8xf32>
    %cst_15 = arith.constant 1.000000e+00 : f32
    %31 = vector.broadcast %cst_15 : f32 to vector<1x8xf32>
    %32 = arith.cmpf oeq, %11, %31 : vector<1x8xf32>
    %33 = vector.extract_strided_slice %21 {offsets = [0, 1], sizes = [16, 1], strides = [1, 1]} : vector<16x4xf32> to vector<16x1xf32>
    %cst_16 = arith.constant 0.000000e+00 : f32
    %34 = vector.shape_cast %32 : vector<1x8xi1> to vector<1x8xi1>
    %35 = vector.broadcast %34 : vector<1x8xi1> to vector<16x8xi1>
    %36 = vector.shape_cast %33 : vector<16x1xf32> to vector<16x1xf32>
    %37 = vector.broadcast %36 : vector<16x1xf32> to vector<16x8xf32>
    %38 = vector.broadcast %cst_16 : f32 to vector<16x8xf32>
    %39 = arith.select %35, %37, %38 : vector<16x8xi1>, vector<16x8xf32>
    %40 = arith.addf %30, %39 : vector<16x8xf32>
    %cst_17 = arith.constant 2.000000e+00 : f32
    %41 = vector.broadcast %cst_17 : f32 to vector<1x8xf32>
    %42 = arith.cmpf oeq, %11, %41 : vector<1x8xf32>
    %43 = vector.extract_strided_slice %21 {offsets = [0, 2], sizes = [16, 1], strides = [1, 1]} : vector<16x4xf32> to vector<16x1xf32>
    %cst_18 = arith.constant 0.000000e+00 : f32
    %44 = vector.shape_cast %42 : vector<1x8xi1> to vector<1x8xi1>
    %45 = vector.broadcast %44 : vector<1x8xi1> to vector<16x8xi1>
    %46 = vector.shape_cast %43 : vector<16x1xf32> to vector<16x1xf32>
    %47 = vector.broadcast %46 : vector<16x1xf32> to vector<16x8xf32>
    %48 = vector.broadcast %cst_18 : f32 to vector<16x8xf32>
    %49 = arith.select %45, %47, %48 : vector<16x8xi1>, vector<16x8xf32>
    %50 = arith.addf %40, %49 : vector<16x8xf32>
    %cst_19 = arith.constant 3.000000e+00 : f32
    %51 = vector.broadcast %cst_19 : f32 to vector<1x8xf32>
    %52 = arith.cmpf oeq, %11, %51 : vector<1x8xf32>
    %53 = vector.extract_strided_slice %21 {offsets = [0, 3], sizes = [16, 1], strides = [1, 1]} : vector<16x4xf32> to vector<16x1xf32>
    %cst_20 = arith.constant 0.000000e+00 : f32
    %54 = vector.shape_cast %52 : vector<1x8xi1> to vector<1x8xi1>
    %55 = vector.broadcast %54 : vector<1x8xi1> to vector<16x8xi1>
    %56 = vector.shape_cast %53 : vector<16x1xf32> to vector<16x1xf32>
    %57 = vector.broadcast %56 : vector<16x1xf32> to vector<16x8xf32>
    %58 = vector.broadcast %cst_20 : f32 to vector<16x8xf32>
    %59 = arith.select %55, %57, %58 : vector<16x8xi1>, vector<16x8xf32>
    %60 = arith.addf %50, %59 : vector<16x8xf32>
    %61 = math.exp %60 : vector<16x8xf32>
    %cst_21 = arith.constant 2.500000e-01 : f32
    %cst_22 = arith.constant 7.500000e-01 : f32
    %62 = vector.broadcast %cst_21 : f32 to vector<1x8xf32>
    %63 = vector.broadcast %cst_22 : f32 to vector<1x8xf32>
    %64 = arith.select %23, %62, %63 : vector<1x8xi1>, vector<1x8xf32>
    %cst_23 = arith.constant 1.000000e+00 : f32
    %65 = vector.broadcast %cst_23 : f32 to vector<16x8xf32>
    %66 = arith.subf %65, %61 : vector<16x8xf32>
    %cst_24 = arith.constant 0.000000e+00 : f32
    %67 = vector.broadcast %cst_24 : f32 to vector<1x8xf32>
    %68 = arith.subf %67, %64 : vector<1x8xf32>
    %69 = vector.broadcast %68 : vector<1x8xf32> to vector<16x8xf32>
    %70 = arith.mulf %69, %66 : vector<16x8xf32>
    %71 = arith.mulf %70, %66 : vector<16x8xf32>
    %72 = arith.mulf %71, %60 : vector<16x8xf32>
    %73 = vector.broadcast %9 : vector<1x128xf32> to vector<16x128xf32>
    %74 = arith.subf %73, %3 : vector<16x128xf32>
    %75 = math.absf %74 : vector<16x128xf32>
    %76 = vector.extract_strided_slice %75 {offsets = [0, 0], sizes = [16, 64], strides = [1, 1]} : vector<16x128xf32> to vector<16x64xf32>
    %77 = vector.extract_strided_slice %75 {offsets = [0, 64], sizes = [16, 64], strides = [1, 1]} : vector<16x128xf32> to vector<16x64xf32>
    %78 = arith.addf %76, %77 : vector<16x64xf32>
    %79 = vector.extract_strided_slice %78 {offsets = [0, 0], sizes = [16, 32], strides = [1, 1]} : vector<16x64xf32> to vector<16x32xf32>
    %80 = vector.extract_strided_slice %78 {offsets = [0, 32], sizes = [16, 32], strides = [1, 1]} : vector<16x64xf32> to vector<16x32xf32>
    %81 = arith.addf %79, %80 : vector<16x32xf32>
    %82 = vector.extract_strided_slice %81 {offsets = [0, 0], sizes = [16, 16], strides = [1, 1]} : vector<16x32xf32> to vector<16x16xf32>
    %83 = vector.extract_strided_slice %81 {offsets = [0, 16], sizes = [16, 16], strides = [1, 1]} : vector<16x32xf32> to vector<16x16xf32>
    %84 = arith.addf %82, %83 : vector<16x16xf32>
    %85 = vector.extract_strided_slice %84 {offsets = [0, 0], sizes = [16, 8], strides = [1, 1]} : vector<16x16xf32> to vector<16x8xf32>
    %86 = vector.extract_strided_slice %84 {offsets = [0, 8], sizes = [16, 8], strides = [1, 1]} : vector<16x16xf32> to vector<16x8xf32>
    %87 = arith.addf %85, %86 : vector<16x8xf32>
    %88 = vector.broadcast %7 : vector<1x256xf32> to vector<16x256xf32>
    %89 = arith.subf %1, %88 : vector<16x256xf32>
    %cst_25 = arith.constant 1.000000e+00 : f32
    %90 = vector.broadcast %cst_25 : f32 to vector<16x256xf32>
    %91 = arith.cmpf olt, %89, %90 : vector<16x256xf32>
    %92 = math.absf %89 : vector<16x256xf32>
    %cst_26 = arith.constant 0.000000e+00 : f32
    %93 = vector.broadcast %cst_26 : f32 to vector<16x256xf32>
    %94 = arith.select %91, %92, %93 : vector<16x256xi1>, vector<16x256xf32>
    %95 = arith.extui %91 : vector<16x256xi1> to vector<16x256xi32>
    %96 = arith.sitofp %95 : vector<16x256xi32> to vector<16x256xf32>
    %97 = vector.extract_strided_slice %94 {offsets = [0, 0], sizes = [16, 128], strides = [1, 1]} : vector<16x256xf32> to vector<16x128xf32>
    %98 = vector.extract_strided_slice %94 {offsets = [0, 128], sizes = [16, 128], strides = [1, 1]} : vector<16x256xf32> to vector<16x128xf32>
    %99 = arith.addf %97, %98 : vector<16x128xf32>
    %100 = vector.extract_strided_slice %96 {offsets = [0, 0], sizes = [16, 128], strides = [1, 1]} : vector<16x256xf32> to vector<16x128xf32>
    %101 = vector.extract_strided_slice %96 {offsets = [0, 128], sizes = [16, 128], strides = [1, 1]} : vector<16x256xf32> to vector<16x128xf32>
    %102 = arith.addf %100, %101 : vector<16x128xf32>
    %103 = vector.extract_strided_slice %99 {offsets = [0, 0], sizes = [16, 64], strides = [1, 1]} : vector<16x128xf32> to vector<16x64xf32>
    %104 = vector.extract_strided_slice %99 {offsets = [0, 64], sizes = [16, 64], strides = [1, 1]} : vector<16x128xf32> to vector<16x64xf32>
    %105 = arith.addf %103, %104 : vector<16x64xf32>
    %106 = vector.extract_strided_slice %102 {offsets = [0, 0], sizes = [16, 64], strides = [1, 1]} : vector<16x128xf32> to vector<16x64xf32>
    %107 = vector.extract_strided_slice %102 {offsets = [0, 64], sizes = [16, 64], strides = [1, 1]} : vector<16x128xf32> to vector<16x64xf32>
    %108 = arith.addf %106, %107 : vector<16x64xf32>
    %109 = vector.extract_strided_slice %105 {offsets = [0, 0], sizes = [16, 32], strides = [1, 1]} : vector<16x64xf32> to vector<16x32xf32>
    %110 = vector.extract_strided_slice %105 {offsets = [0, 32], sizes = [16, 32], strides = [1, 1]} : vector<16x64xf32> to vector<16x32xf32>
    %111 = arith.addf %109, %110 : vector<16x32xf32>
    %112 = vector.extract_strided_slice %108 {offsets = [0, 0], sizes = [16, 32], strides = [1, 1]} : vector<16x64xf32> to vector<16x32xf32>
    %113 = vector.extract_strided_slice %108 {offsets = [0, 32], sizes = [16, 32], strides = [1, 1]} : vector<16x64xf32> to vector<16x32xf32>
    %114 = arith.addf %112, %113 : vector<16x32xf32>
    %115 = vector.extract_strided_slice %111 {offsets = [0, 0], sizes = [16, 16], strides = [1, 1]} : vector<16x32xf32> to vector<16x16xf32>
    %116 = vector.extract_strided_slice %111 {offsets = [0, 16], sizes = [16, 16], strides = [1, 1]} : vector<16x32xf32> to vector<16x16xf32>
    %117 = arith.addf %115, %116 : vector<16x16xf32>
    %118 = vector.extract_strided_slice %114 {offsets = [0, 0], sizes = [16, 16], strides = [1, 1]} : vector<16x32xf32> to vector<16x16xf32>
    %119 = vector.extract_strided_slice %114 {offsets = [0, 16], sizes = [16, 16], strides = [1, 1]} : vector<16x32xf32> to vector<16x16xf32>
    %120 = arith.addf %118, %119 : vector<16x16xf32>
    %121 = vector.extract_strided_slice %117 {offsets = [0, 0], sizes = [16, 8], strides = [1, 1]} : vector<16x16xf32> to vector<16x8xf32>
    %122 = vector.extract_strided_slice %117 {offsets = [0, 8], sizes = [16, 8], strides = [1, 1]} : vector<16x16xf32> to vector<16x8xf32>
    %123 = arith.addf %121, %122 : vector<16x8xf32>
    %124 = vector.extract_strided_slice %120 {offsets = [0, 0], sizes = [16, 8], strides = [1, 1]} : vector<16x16xf32> to vector<16x8xf32>
    %125 = vector.extract_strided_slice %120 {offsets = [0, 8], sizes = [16, 8], strides = [1, 1]} : vector<16x16xf32> to vector<16x8xf32>
    %126 = arith.addf %124, %125 : vector<16x8xf32>
    %cst_27 = arith.constant 1.000000e+00 : f32
    %127 = vector.broadcast %cst_27 : f32 to vector<16x8xf32>
    %128 = arith.maximumf %126, %127 : vector<16x8xf32>
    %129 = arith.divf %123, %128 : vector<16x8xf32>
    %cst_28 = arith.constant 2.000000e+00 : f32
    %130 = vector.broadcast %cst_28 : f32 to vector<16x8xf32>
    %131 = arith.mulf %130, %72 : vector<16x8xf32>
    %cst_29 = arith.constant 5.000000e+00 : f32
    %132 = vector.broadcast %cst_29 : f32 to vector<16x8xf32>
    %133 = arith.mulf %132, %129 : vector<16x8xf32>
    %134 = arith.addf %131, %133 : vector<16x8xf32>
    %c0_30 = arith.constant 0 : index
    %c0_31 = arith.constant 0 : index
    %c0_32 = arith.constant 0 : index
    %135 = vector.load %arg2[%c0_30, %c0_31, %c0_32] : memref<4x16x128xf32, #tpu.memory_space<vmem>>, vector<1x16x8xf32>
    %136 = vector.shape_cast %135 : vector<1x16x8xf32> to vector<16x8xf32>
    %137 = vector.shape_cast %134 : vector<16x8xf32> to vector<1x16x8xf32>
    tpu.vector_store %arg2[%c0_30, %c0_31, %c0_32], %137 {strides = array<i32>} : memref<4x16x128xf32, #tpu.memory_space<vmem>>, vector<1x16x8xf32>,
    %c0_33 = arith.constant 0 : index
    %c0_34 = arith.constant 0 : index
    %c8 = arith.constant 8 : index
    %138 = vector.load %arg2[%c0_33, %c0_34, %c8] : memref<4x16x128xf32, #tpu.memory_space<vmem>>, vector<1x16x8xf32>
    %139 = vector.shape_cast %138 : vector<1x16x8xf32> to vector<16x8xf32>
    %140 = vector.shape_cast %87 : vector<16x8xf32> to vector<1x16x8xf32>
    tpu.vector_store %arg2[%c0_33, %c0_34, %c8], %140 {strides = array<i32>} : memref<4x16x128xf32, #tpu.memory_space<vmem>>, vector<1x16x8xf32>,
    %c1 = arith.constant 1 : index
    %c0_35 = arith.constant 0 : index
    %c0_36 = arith.constant 0 : index
    %141 = vector.load %arg1[%c1, %c0_35, %c0_36] : memref<4x24x512xf32, #tpu.memory_space<vmem>>, vector<1x16x256xf32>
    %142 = vector.shape_cast %141 : vector<1x16x256xf32> to vector<16x256xf32>
    %c1_37 = arith.constant 1 : index
    %c0_38 = arith.constant 0 : index
    %c256_39 = arith.constant 256 : index
    %143 = vector.load %arg1[%c1_37, %c0_38, %c256_39] : memref<4x24x512xf32, #tpu.memory_space<vmem>>, vector<1x16x128xf32>
    %144 = vector.shape_cast %143 : vector<1x16x128xf32> to vector<16x128xf32>
    %c1_40 = arith.constant 1 : index
    %c0_41 = arith.constant 0 : index
    %c384_42 = arith.constant 384 : index
    %145 = vector.load %arg1[%c1_40, %c0_41, %c384_42] : memref<4x24x512xf32, #tpu.memory_space<vmem>>, vector<1x16x4xf32>
    %146 = vector.shape_cast %145 : vector<1x16x4xf32> to vector<16x4xf32>
    %c1_43 = arith.constant 1 : index
    %c16_44 = arith.constant 16 : index
    %c0_45 = arith.constant 0 : index
    %147 = vector.load %arg1[%c1_43, %c16_44, %c0_45] : memref<4x24x512xf32, #tpu.memory_space<vmem>>, vector<1x1x256xf32>
    %148 = vector.shape_cast %147 : vector<1x1x256xf32> to vector<1x256xf32>
    %c1_46 = arith.constant 1 : index
    %c17_47 = arith.constant 17 : index
    %c0_48 = arith.constant 0 : index
    %149 = vector.load %arg1[%c1_46, %c17_47, %c0_48] : memref<4x24x512xf32, #tpu.memory_space<vmem>>, vector<1x1x128xf32>
    %150 = vector.shape_cast %149 : vector<1x1x128xf32> to vector<1x128xf32>
    %c1_49 = arith.constant 1 : index
    %c18_50 = arith.constant 18 : index
    %c0_51 = arith.constant 0 : index
    %151 = vector.load %arg1[%c1_49, %c18_50, %c0_51] : memref<4x24x512xf32, #tpu.memory_space<vmem>>, vector<1x1x8xf32>
    %152 = vector.shape_cast %151 : vector<1x1x8xf32> to vector<1x8xf32>
    %cst_52 = arith.constant dense<0xFF800000> : vector<16xf32>
    %153 = vector.multi_reduction <maximumf>, %146, %cst_52 [1] : vector<16x4xf32> to vector<16xf32>
    %154 = vector.shape_cast %153 : vector<16xf32> to vector<16x1xf32>
    %155 = vector.broadcast %154 : vector<16x1xf32> to vector<16x4xf32>
    %156 = arith.subf %146, %155 : vector<16x4xf32>
    %157 = math.exp %156 : vector<16x4xf32>
    %cst_53 = arith.constant dense<0.000000e+00> : vector<16xf32>
    %158 = vector.multi_reduction <add>, %157, %cst_53 [1] : vector<16x4xf32> to vector<16xf32>
    %159 = vector.shape_cast %158 : vector<16xf32> to vector<16x1xf32>
    %160 = math.log %159 : vector<16x1xf32>
    %161 = vector.broadcast %160 : vector<16x1xf32> to vector<16x4xf32>
    %162 = arith.subf %156, %161 : vector<16x4xf32>
    %cst_54 = arith.constant 0.000000e+00 : f32
    %163 = vector.broadcast %cst_54 : f32 to vector<1x8xf32>
    %164 = arith.cmpf oeq, %152, %163 : vector<1x8xf32>
    %165 = vector.extract_strided_slice %162 {offsets = [0, 0], sizes = [16, 1], strides = [1, 1]} : vector<16x4xf32> to vector<16x1xf32>
    %cst_55 = arith.constant 0.000000e+00 : f32
    %166 = vector.shape_cast %164 : vector<1x8xi1> to vector<1x8xi1>
    %167 = vector.broadcast %166 : vector<1x8xi1> to vector<16x8xi1>
    %168 = vector.shape_cast %165 : vector<16x1xf32> to vector<16x1xf32>
    %169 = vector.broadcast %168 : vector<16x1xf32> to vector<16x8xf32>
    %170 = vector.broadcast %cst_55 : f32 to vector<16x8xf32>
    %171 = arith.select %167, %169, %170 : vector<16x8xi1>, vector<16x8xf32>
    %cst_56 = arith.constant 1.000000e+00 : f32
    %172 = vector.broadcast %cst_56 : f32 to vector<1x8xf32>
    %173 = arith.cmpf oeq, %152, %172 : vector<1x8xf32>
    %174 = vector.extract_strided_slice %162 {offsets = [0, 1], sizes = [16, 1], strides = [1, 1]} : vector<16x4xf32> to vector<16x1xf32>
    %cst_57 = arith.constant 0.000000e+00 : f32
    %175 = vector.shape_cast %173 : vector<1x8xi1> to vector<1x8xi1>
    %176 = vector.broadcast %175 : vector<1x8xi1> to vector<16x8xi1>
    %177 = vector.shape_cast %174 : vector<16x1xf32> to vector<16x1xf32>
    %178 = vector.broadcast %177 : vector<16x1xf32> to vector<16x8xf32>
    %179 = vector.broadcast %cst_57 : f32 to vector<16x8xf32>
    %180 = arith.select %176, %178, %179 : vector<16x8xi1>, vector<16x8xf32>
    %181 = arith.addf %171, %180 : vector<16x8xf32>
    %cst_58 = arith.constant 2.000000e+00 : f32
    %182 = vector.broadcast %cst_58 : f32 to vector<1x8xf32>
    %183 = arith.cmpf oeq, %152, %182 : vector<1x8xf32>
    %184 = vector.extract_strided_slice %162 {offsets = [0, 2], sizes = [16, 1], strides = [1, 1]} : vector<16x4xf32> to vector<16x1xf32>
    %cst_59 = arith.constant 0.000000e+00 : f32
    %185 = vector.shape_cast %183 : vector<1x8xi1> to vector<1x8xi1>
    %186 = vector.broadcast %185 : vector<1x8xi1> to vector<16x8xi1>
    %187 = vector.shape_cast %184 : vector<16x1xf32> to vector<16x1xf32>
    %188 = vector.broadcast %187 : vector<16x1xf32> to vector<16x8xf32>
    %189 = vector.broadcast %cst_59 : f32 to vector<16x8xf32>
    %190 = arith.select %186, %188, %189 : vector<16x8xi1>, vector<16x8xf32>
    %191 = arith.addf %181, %190 : vector<16x8xf32>
    %cst_60 = arith.constant 3.000000e+00 : f32
    %192 = vector.broadcast %cst_60 : f32 to vector<1x8xf32>
    %193 = arith.cmpf oeq, %152, %192 : vector<1x8xf32>
    %194 = vector.extract_strided_slice %162 {offsets = [0, 3], sizes = [16, 1], strides = [1, 1]} : vector<16x4xf32> to vector<16x1xf32>
    %cst_61 = arith.constant 0.000000e+00 : f32
    %195 = vector.shape_cast %193 : vector<1x8xi1> to vector<1x8xi1>
    %196 = vector.broadcast %195 : vector<1x8xi1> to vector<16x8xi1>
    %197 = vector.shape_cast %194 : vector<16x1xf32> to vector<16x1xf32>
    %198 = vector.broadcast %197 : vector<16x1xf32> to vector<16x8xf32>
    %199 = vector.broadcast %cst_61 : f32 to vector<16x8xf32>
    %200 = arith.select %196, %198, %199 : vector<16x8xi1>, vector<16x8xf32>
    %201 = arith.addf %191, %200 : vector<16x8xf32>
    %202 = math.exp %201 : vector<16x8xf32>
    %cst_62 = arith.constant 2.500000e-01 : f32
    %cst_63 = arith.constant 7.500000e-01 : f32
    %203 = vector.broadcast %cst_62 : f32 to vector<1x8xf32>
    %204 = vector.broadcast %cst_63 : f32 to vector<1x8xf32>
    %205 = arith.select %164, %203, %204 : vector<1x8xi1>, vector<1x8xf32>
    %cst_64 = arith.constant 1.000000e+00 : f32
    %206 = vector.broadcast %cst_64 : f32 to vector<16x8xf32>
    %207 = arith.subf %206, %202 : vector<16x8xf32>
    %cst_65 = arith.constant 0.000000e+00 : f32
    %208 = vector.broadcast %cst_65 : f32 to vector<1x8xf32>
    %209 = arith.subf %208, %205 : vector<1x8xf32>
    %210 = vector.broadcast %209 : vector<1x8xf32> to vector<16x8xf32>
    %211 = arith.mulf %210, %207 : vector<16x8xf32>
    %212 = arith.mulf %211, %207 : vector<16x8xf32>
    %213 = arith.mulf %212, %201 : vector<16x8xf32>
    %214 = vector.broadcast %150 : vector<1x128xf32> to vector<16x128xf32>
    %215 = arith.subf %214, %144 : vector<16x128xf32>
    %216 = math.absf %215 : vector<16x128xf32>
    %217 = vector.extract_strided_slice %216 {offsets = [0, 0], sizes = [16, 64], strides = [1, 1]} : vector<16x128xf32> to vector<16x64xf32>
    %218 = vector.extract_strided_slice %216 {offsets = [0, 64], sizes = [16, 64], strides = [1, 1]} : vector<16x128xf32> to vector<16x64xf32>
    %219 = arith.addf %217, %218 : vector<16x64xf32>
    %220 = vector.extract_strided_slice %219 {offsets = [0, 0], sizes = [16, 32], strides = [1, 1]} : vector<16x64xf32> to vector<16x32xf32>
    %221 = vector.extract_strided_slice %219 {offsets = [0, 32], sizes = [16, 32], strides = [1, 1]} : vector<16x64xf32> to vector<16x32xf32>
    %222 = arith.addf %220, %221 : vector<16x32xf32>
    %223 = vector.extract_strided_slice %222 {offsets = [0, 0], sizes = [16, 16], strides = [1, 1]} : vector<16x32xf32> to vector<16x16xf32>
    %224 = vector.extract_strided_slice %222 {offsets = [0, 16], sizes = [16, 16], strides = [1, 1]} : vector<16x32xf32> to vector<16x16xf32>
    %225 = arith.addf %223, %224 : vector<16x16xf32>
    %226 = vector.extract_strided_slice %225 {offsets = [0, 0], sizes = [16, 8], strides = [1, 1]} : vector<16x16xf32> to vector<16x8xf32>
    %227 = vector.extract_strided_slice %225 {offsets = [0, 8], sizes = [16, 8], strides = [1, 1]} : vector<16x16xf32> to vector<16x8xf32>
    %228 = arith.addf %226, %227 : vector<16x8xf32>
    %229 = vector.broadcast %148 : vector<1x256xf32> to vector<16x256xf32>
    %230 = arith.subf %142, %229 : vector<16x256xf32>
    %cst_66 = arith.constant 1.000000e+00 : f32
    %231 = vector.broadcast %cst_66 : f32 to vector<16x256xf32>
    %232 = arith.cmpf olt, %230, %231 : vector<16x256xf32>
    %233 = math.absf %230 : vector<16x256xf32>
    %cst_67 = arith.constant 0.000000e+00 : f32
    %234 = vector.broadcast %cst_67 : f32 to vector<16x256xf32>
    %235 = arith.select %232, %233, %234 : vector<16x256xi1>, vector<16x256xf32>
    %236 = arith.extui %232 : vector<16x256xi1> to vector<16x256xi32>
    %237 = arith.sitofp %236 : vector<16x256xi32> to vector<16x256xf32>
    %238 = vector.extract_strided_slice %235 {offsets = [0, 0], sizes = [16, 128], strides = [1, 1]} : vector<16x256xf32> to vector<16x128xf32>
    %239 = vector.extract_strided_slice %235 {offsets = [0, 128], sizes = [16, 128], strides = [1, 1]} : vector<16x256xf32> to vector<16x128xf32>
    %240 = arith.addf %238, %239 : vector<16x128xf32>
    %241 = vector.extract_strided_slice %237 {offsets = [0, 0], sizes = [16, 128], strides = [1, 1]} : vector<16x256xf32> to vector<16x128xf32>
    %242 = vector.extract_strided_slice %237 {offsets = [0, 128], sizes = [16, 128], strides = [1, 1]} : vector<16x256xf32> to vector<16x128xf32>
    %243 = arith.addf %241, %242 : vector<16x128xf32>
    %244 = vector.extract_strided_slice %240 {offsets = [0, 0], sizes = [16, 64], strides = [1, 1]} : vector<16x128xf32> to vector<16x64xf32>
    %245 = vector.extract_strided_slice %240 {offsets = [0, 64], sizes = [16, 64], strides = [1, 1]} : vector<16x128xf32> to vector<16x64xf32>
    %246 = arith.addf %244, %245 : vector<16x64xf32>
    %247 = vector.extract_strided_slice %243 {offsets = [0, 0], sizes = [16, 64], strides = [1, 1]} : vector<16x128xf32> to vector<16x64xf32>
    %248 = vector.extract_strided_slice %243 {offsets = [0, 64], sizes = [16, 64], strides = [1, 1]} : vector<16x128xf32> to vector<16x64xf32>
    %249 = arith.addf %247, %248 : vector<16x64xf32>
    %250 = vector.extract_strided_slice %246 {offsets = [0, 0], sizes = [16, 32], strides = [1, 1]} : vector<16x64xf32> to vector<16x32xf32>
    %251 = vector.extract_strided_slice %246 {offsets = [0, 32], sizes = [16, 32], strides = [1, 1]} : vector<16x64xf32> to vector<16x32xf32>
    %252 = arith.addf %250, %251 : vector<16x32xf32>
    %253 = vector.extract_strided_slice %249 {offsets = [0, 0], sizes = [16, 32], strides = [1, 1]} : vector<16x64xf32> to vector<16x32xf32>
    %254 = vector.extract_strided_slice %249 {offsets = [0, 32], sizes = [16, 32], strides = [1, 1]} : vector<16x64xf32> to vector<16x32xf32>
    %255 = arith.addf %253, %254 : vector<16x32xf32>
    %256 = vector.extract_strided_slice %252 {offsets = [0, 0], sizes = [16, 16], strides = [1, 1]} : vector<16x32xf32> to vector<16x16xf32>
    %257 = vector.extract_strided_slice %252 {offsets = [0, 16], sizes = [16, 16], strides = [1, 1]} : vector<16x32xf32> to vector<16x16xf32>
    %258 = arith.addf %256, %257 : vector<16x16xf32>
    %259 = vector.extract_strided_slice %255 {offsets = [0, 0], sizes = [16, 16], strides = [1, 1]} : vector<16x32xf32> to vector<16x16xf32>
    %260 = vector.extract_strided_slice %255 {offsets = [0, 16], sizes = [16, 16], strides = [1, 1]} : vector<16x32xf32> to vector<16x16xf32>
    %261 = arith.addf %259, %260 : vector<16x16xf32>
    %262 = vector.extract_strided_slice %258 {offsets = [0, 0], sizes = [16, 8], strides = [1, 1]} : vector<16x16xf32> to vector<16x8xf32>
    %263 = vector.extract_strided_slice %258 {offsets = [0, 8], sizes = [16, 8], strides = [1, 1]} : vector<16x16xf32> to vector<16x8xf32>
    %264 = arith.addf %262, %263 : vector<16x8xf32>
    %265 = vector.extract_strided_slice %261 {offsets = [0, 0], sizes = [16, 8], strides = [1, 1]} : vector<16x16xf32> to vector<16x8xf32>
    %266 = vector.extract_strided_slice %261 {offsets = [0, 8], sizes = [16, 8], strides = [1, 1]} : vector<16x16xf32> to vector<16x8xf32>
    %267 = arith.addf %265, %266 : vector<16x8xf32>
    %cst_68 = arith.constant 1.000000e+00 : f32
    %268 = vector.broadcast %cst_68 : f32 to vector<16x8xf32>
    %269 = arith.maximumf %267, %268 : vector<16x8xf32>
    %270 = arith.divf %264, %269 : vector<16x8xf32>
    %cst_69 = arith.constant 2.000000e+00 : f32
    %271 = vector.broadcast %cst_69 : f32 to vector<16x8xf32>
    %272 = arith.mulf %271, %213 : vector<16x8xf32>
    %cst_70 = arith.constant 5.000000e+00 : f32
    %273 = vector.broadcast %cst_70 : f32 to vector<16x8xf32>
    %274 = arith.mulf %273, %270 : vector<16x8xf32>
    %275 = arith.addf %272, %274 : vector<16x8xf32>
    %c1_71 = arith.constant 1 : index
    %c0_72 = arith.constant 0 : index
    %c0_73 = arith.constant 0 : index
    %276 = vector.load %arg2[%c1_71, %c0_72, %c0_73] : memref<4x16x128xf32, #tpu.memory_space<vmem>>, vector<1x16x8xf32>
    %277 = vector.shape_cast %276 : vector<1x16x8xf32> to vector<16x8xf32>
    %278 = vector.shape_cast %275 : vector<16x8xf32> to vector<1x16x8xf32>
    tpu.vector_store %arg2[%c1_71, %c0_72, %c0_73], %278 {strides = array<i32>} : memref<4x16x128xf32, #tpu.memory_space<vmem>>, vector<1x16x8xf32>,
    %c1_74 = arith.constant 1 : index
    %c0_75 = arith.constant 0 : index
    %c8_76 = arith.constant 8 : index
    %279 = vector.load %arg2[%c1_74, %c0_75, %c8_76] : memref<4x16x128xf32, #tpu.memory_space<vmem>>, vector<1x16x8xf32>
    %280 = vector.shape_cast %279 : vector<1x16x8xf32> to vector<16x8xf32>
    %281 = vector.shape_cast %228 : vector<16x8xf32> to vector<1x16x8xf32>
    tpu.vector_store %arg2[%c1_74, %c0_75, %c8_76], %281 {strides = array<i32>} : memref<4x16x128xf32, #tpu.memory_space<vmem>>, vector<1x16x8xf32>,
    %c2 = arith.constant 2 : index
    %c0_77 = arith.constant 0 : index
    %c0_78 = arith.constant 0 : index
    %282 = vector.load %arg1[%c2, %c0_77, %c0_78] : memref<4x24x512xf32, #tpu.memory_space<vmem>>, vector<1x16x256xf32>
    %283 = vector.shape_cast %282 : vector<1x16x256xf32> to vector<16x256xf32>
    %c2_79 = arith.constant 2 : index
    %c0_80 = arith.constant 0 : index
    %c256_81 = arith.constant 256 : index
    %284 = vector.load %arg1[%c2_79, %c0_80, %c256_81] : memref<4x24x512xf32, #tpu.memory_space<vmem>>, vector<1x16x128xf32>
    %285 = vector.shape_cast %284 : vector<1x16x128xf32> to vector<16x128xf32>
    %c2_82 = arith.constant 2 : index
    %c0_83 = arith.constant 0 : index
    %c384_84 = arith.constant 384 : index
    %286 = vector.load %arg1[%c2_82, %c0_83, %c384_84] : memref<4x24x512xf32, #tpu.memory_space<vmem>>, vector<1x16x4xf32>
    %287 = vector.shape_cast %286 : vector<1x16x4xf32> to vector<16x4xf32>
    %c2_85 = arith.constant 2 : index
    %c16_86 = arith.constant 16 : index
    %c0_87 = arith.constant 0 : index
    %288 = vector.load %arg1[%c2_85, %c16_86, %c0_87] : memref<4x24x512xf32, #tpu.memory_space<vmem>>, vector<1x1x256xf32>
    %289 = vector.shape_cast %288 : vector<1x1x256xf32> to vector<1x256xf32>
    %c2_88 = arith.constant 2 : index
    %c17_89 = arith.constant 17 : index
    %c0_90 = arith.constant 0 : index
    %290 = vector.load %arg1[%c2_88, %c17_89, %c0_90] : memref<4x24x512xf32, #tpu.memory_space<vmem>>, vector<1x1x128xf32>
    %291 = vector.shape_cast %290 : vector<1x1x128xf32> to vector<1x128xf32>
    %c2_91 = arith.constant 2 : index
    %c18_92 = arith.constant 18 : index
    %c0_93 = arith.constant 0 : index
    %292 = vector.load %arg1[%c2_91, %c18_92, %c0_93] : memref<4x24x512xf32, #tpu.memory_space<vmem>>, vector<1x1x8xf32>
    %293 = vector.shape_cast %292 : vector<1x1x8xf32> to vector<1x8xf32>
    %cst_94 = arith.constant dense<0xFF800000> : vector<16xf32>
    %294 = vector.multi_reduction <maximumf>, %287, %cst_94 [1] : vector<16x4xf32> to vector<16xf32>
    %295 = vector.shape_cast %294 : vector<16xf32> to vector<16x1xf32>
    %296 = vector.broadcast %295 : vector<16x1xf32> to vector<16x4xf32>
    %297 = arith.subf %287, %296 : vector<16x4xf32>
    %298 = math.exp %297 : vector<16x4xf32>
    %cst_95 = arith.constant dense<0.000000e+00> : vector<16xf32>
    %299 = vector.multi_reduction <add>, %298, %cst_95 [1] : vector<16x4xf32> to vector<16xf32>
    %300 = vector.shape_cast %299 : vector<16xf32> to vector<16x1xf32>
    %301 = math.log %300 : vector<16x1xf32>
    %302 = vector.broadcast %301 : vector<16x1xf32> to vector<16x4xf32>
    %303 = arith.subf %297, %302 : vector<16x4xf32>
    %cst_96 = arith.constant 0.000000e+00 : f32
    %304 = vector.broadcast %cst_96 : f32 to vector<1x8xf32>
    %305 = arith.cmpf oeq, %293, %304 : vector<1x8xf32>
    %306 = vector.extract_strided_slice %303 {offsets = [0, 0], sizes = [16, 1], strides = [1, 1]} : vector<16x4xf32> to vector<16x1xf32>
    %cst_97 = arith.constant 0.000000e+00 : f32
    %307 = vector.shape_cast %305 : vector<1x8xi1> to vector<1x8xi1>
    %308 = vector.broadcast %307 : vector<1x8xi1> to vector<16x8xi1>
    %309 = vector.shape_cast %306 : vector<16x1xf32> to vector<16x1xf32>
    %310 = vector.broadcast %309 : vector<16x1xf32> to vector<16x8xf32>
    %311 = vector.broadcast %cst_97 : f32 to vector<16x8xf32>
    %312 = arith.select %308, %310, %311 : vector<16x8xi1>, vector<16x8xf32>
    %cst_98 = arith.constant 1.000000e+00 : f32
    %313 = vector.broadcast %cst_98 : f32 to vector<1x8xf32>
    %314 = arith.cmpf oeq, %293, %313 : vector<1x8xf32>
    %315 = vector.extract_strided_slice %303 {offsets = [0, 1], sizes = [16, 1], strides = [1, 1]} : vector<16x4xf32> to vector<16x1xf32>
    %cst_99 = arith.constant 0.000000e+00 : f32
    %316 = vector.shape_cast %314 : vector<1x8xi1> to vector<1x8xi1>
    %317 = vector.broadcast %316 : vector<1x8xi1> to vector<16x8xi1>
    %318 = vector.shape_cast %315 : vector<16x1xf32> to vector<16x1xf32>
    %319 = vector.broadcast %318 : vector<16x1xf32> to vector<16x8xf32>
    %320 = vector.broadcast %cst_99 : f32 to vector<16x8xf32>
    %321 = arith.select %317, %319, %320 : vector<16x8xi1>, vector<16x8xf32>
    %322 = arith.addf %312, %321 : vector<16x8xf32>
    %cst_100 = arith.constant 2.000000e+00 : f32
    %323 = vector.broadcast %cst_100 : f32 to vector<1x8xf32>
    %324 = arith.cmpf oeq, %293, %323 : vector<1x8xf32>
    %325 = vector.extract_strided_slice %303 {offsets = [0, 2], sizes = [16, 1], strides = [1, 1]} : vector<16x4xf32> to vector<16x1xf32>
    %cst_101 = arith.constant 0.000000e+00 : f32
    %326 = vector.shape_cast %324 : vector<1x8xi1> to vector<1x8xi1>
    %327 = vector.broadcast %326 : vector<1x8xi1> to vector<16x8xi1>
    %328 = vector.shape_cast %325 : vector<16x1xf32> to vector<16x1xf32>
    %329 = vector.broadcast %328 : vector<16x1xf32> to vector<16x8xf32>
    %330 = vector.broadcast %cst_101 : f32 to vector<16x8xf32>
    %331 = arith.select %327, %329, %330 : vector<16x8xi1>, vector<16x8xf32>
    %332 = arith.addf %322, %331 : vector<16x8xf32>
    %cst_102 = arith.constant 3.000000e+00 : f32
    %333 = vector.broadcast %cst_102 : f32 to vector<1x8xf32>
    %334 = arith.cmpf oeq, %293, %333 : vector<1x8xf32>
    %335 = vector.extract_strided_slice %303 {offsets = [0, 3], sizes = [16, 1], strides = [1, 1]} : vector<16x4xf32> to vector<16x1xf32>
    %cst_103 = arith.constant 0.000000e+00 : f32
    %336 = vector.shape_cast %334 : vector<1x8xi1> to vector<1x8xi1>
    %337 = vector.broadcast %336 : vector<1x8xi1> to vector<16x8xi1>
    %338 = vector.shape_cast %335 : vector<16x1xf32> to vector<16x1xf32>
    %339 = vector.broadcast %338 : vector<16x1xf32> to vector<16x8xf32>
    %340 = vector.broadcast %cst_103 : f32 to vector<16x8xf32>
    %341 = arith.select %337, %339, %340 : vector<16x8xi1>, vector<16x8xf32>
    %342 = arith.addf %332, %341 : vector<16x8xf32>
    %343 = math.exp %342 : vector<16x8xf32>
    %cst_104 = arith.constant 2.500000e-01 : f32
    %cst_105 = arith.constant 7.500000e-01 : f32
    %344 = vector.broadcast %cst_104 : f32 to vector<1x8xf32>
    %345 = vector.broadcast %cst_105 : f32 to vector<1x8xf32>
    %346 = arith.select %305, %344, %345 : vector<1x8xi1>, vector<1x8xf32>
    %cst_106 = arith.constant 1.000000e+00 : f32
    %347 = vector.broadcast %cst_106 : f32 to vector<16x8xf32>
    %348 = arith.subf %347, %343 : vector<16x8xf32>
    %cst_107 = arith.constant 0.000000e+00 : f32
    %349 = vector.broadcast %cst_107 : f32 to vector<1x8xf32>
    %350 = arith.subf %349, %346 : vector<1x8xf32>
    %351 = vector.broadcast %350 : vector<1x8xf32> to vector<16x8xf32>
    %352 = arith.mulf %351, %348 : vector<16x8xf32>
    %353 = arith.mulf %352, %348 : vector<16x8xf32>
    %354 = arith.mulf %353, %342 : vector<16x8xf32>
    %355 = vector.broadcast %291 : vector<1x128xf32> to vector<16x128xf32>
    %356 = arith.subf %355, %285 : vector<16x128xf32>
    %357 = math.absf %356 : vector<16x128xf32>
    %358 = vector.extract_strided_slice %357 {offsets = [0, 0], sizes = [16, 64], strides = [1, 1]} : vector<16x128xf32> to vector<16x64xf32>
    %359 = vector.extract_strided_slice %357 {offsets = [0, 64], sizes = [16, 64], strides = [1, 1]} : vector<16x128xf32> to vector<16x64xf32>
    %360 = arith.addf %358, %359 : vector<16x64xf32>
    %361 = vector.extract_strided_slice %360 {offsets = [0, 0], sizes = [16, 32], strides = [1, 1]} : vector<16x64xf32> to vector<16x32xf32>
    %362 = vector.extract_strided_slice %360 {offsets = [0, 32], sizes = [16, 32], strides = [1, 1]} : vector<16x64xf32> to vector<16x32xf32>
    %363 = arith.addf %361, %362 : vector<16x32xf32>
    %364 = vector.extract_strided_slice %363 {offsets = [0, 0], sizes = [16, 16], strides = [1, 1]} : vector<16x32xf32> to vector<16x16xf32>
    %365 = vector.extract_strided_slice %363 {offsets = [0, 16], sizes = [16, 16], strides = [1, 1]} : vector<16x32xf32> to vector<16x16xf32>
    %366 = arith.addf %364, %365 : vector<16x16xf32>
    %367 = vector.extract_strided_slice %366 {offsets = [0, 0], sizes = [16, 8], strides = [1, 1]} : vector<16x16xf32> to vector<16x8xf32>
    %368 = vector.extract_strided_slice %366 {offsets = [0, 8], sizes = [16, 8], strides = [1, 1]} : vector<16x16xf32> to vector<16x8xf32>
    %369 = arith.addf %367, %368 : vector<16x8xf32>
    %370 = vector.broadcast %289 : vector<1x256xf32> to vector<16x256xf32>
    %371 = arith.subf %283, %370 : vector<16x256xf32>
    %cst_108 = arith.constant 1.000000e+00 : f32
    %372 = vector.broadcast %cst_108 : f32 to vector<16x256xf32>
    %373 = arith.cmpf olt, %371, %372 : vector<16x256xf32>
    %374 = math.absf %371 : vector<16x256xf32>
    %cst_109 = arith.constant 0.000000e+00 : f32
    %375 = vector.broadcast %cst_109 : f32 to vector<16x256xf32>
    %376 = arith.select %373, %374, %375 : vector<16x256xi1>, vector<16x256xf32>
    %377 = arith.extui %373 : vector<16x256xi1> to vector<16x256xi32>
    %378 = arith.sitofp %377 : vector<16x256xi32> to vector<16x256xf32>
    %379 = vector.extract_strided_slice %376 {offsets = [0, 0], sizes = [16, 128], strides = [1, 1]} : vector<16x256xf32> to vector<16x128xf32>
    %380 = vector.extract_strided_slice %376 {offsets = [0, 128], sizes = [16, 128], strides = [1, 1]} : vector<16x256xf32> to vector<16x128xf32>
    %381 = arith.addf %379, %380 : vector<16x128xf32>
    %382 = vector.extract_strided_slice %378 {offsets = [0, 0], sizes = [16, 128], strides = [1, 1]} : vector<16x256xf32> to vector<16x128xf32>
    %383 = vector.extract_strided_slice %378 {offsets = [0, 128], sizes = [16, 128], strides = [1, 1]} : vector<16x256xf32> to vector<16x128xf32>
    %384 = arith.addf %382, %383 : vector<16x128xf32>
    %385 = vector.extract_strided_slice %381 {offsets = [0, 0], sizes = [16, 64], strides = [1, 1]} : vector<16x128xf32> to vector<16x64xf32>
    %386 = vector.extract_strided_slice %381 {offsets = [0, 64], sizes = [16, 64], strides = [1, 1]} : vector<16x128xf32> to vector<16x64xf32>
    %387 = arith.addf %385, %386 : vector<16x64xf32>
    %388 = vector.extract_strided_slice %384 {offsets = [0, 0], sizes = [16, 64], strides = [1, 1]} : vector<16x128xf32> to vector<16x64xf32>
    %389 = vector.extract_strided_slice %384 {offsets = [0, 64], sizes = [16, 64], strides = [1, 1]} : vector<16x128xf32> to vector<16x64xf32>
    %390 = arith.addf %388, %389 : vector<16x64xf32>
    %391 = vector.extract_strided_slice %387 {offsets = [0, 0], sizes = [16, 32], strides = [1, 1]} : vector<16x64xf32> to vector<16x32xf32>
    %392 = vector.extract_strided_slice %387 {offsets = [0, 32], sizes = [16, 32], strides = [1, 1]} : vector<16x64xf32> to vector<16x32xf32>
    %393 = arith.addf %391, %392 : vector<16x32xf32>
    %394 = vector.extract_strided_slice %390 {offsets = [0, 0], sizes = [16, 32], strides = [1, 1]} : vector<16x64xf32> to vector<16x32xf32>
    %395 = vector.extract_strided_slice %390 {offsets = [0, 32], sizes = [16, 32], strides = [1, 1]} : vector<16x64xf32> to vector<16x32xf32>
    %396 = arith.addf %394, %395 : vector<16x32xf32>
    %397 = vector.extract_strided_slice %393 {offsets = [0, 0], sizes = [16, 16], strides = [1, 1]} : vector<16x32xf32> to vector<16x16xf32>
    %398 = vector.extract_strided_slice %393 {offsets = [0, 16], sizes = [16, 16], strides = [1, 1]} : vector<16x32xf32> to vector<16x16xf32>
    %399 = arith.addf %397, %398 : vector<16x16xf32>
    %400 = vector.extract_strided_slice %396 {offsets = [0, 0], sizes = [16, 16], strides = [1, 1]} : vector<16x32xf32> to vector<16x16xf32>
    %401 = vector.extract_strided_slice %396 {offsets = [0, 16], sizes = [16, 16], strides = [1, 1]} : vector<16x32xf32> to vector<16x16xf32>
    %402 = arith.addf %400, %401 : vector<16x16xf32>
    %403 = vector.extract_strided_slice %399 {offsets = [0, 0], sizes = [16, 8], strides = [1, 1]} : vector<16x16xf32> to vector<16x8xf32>
    %404 = vector.extract_strided_slice %399 {offsets = [0, 8], sizes = [16, 8], strides = [1, 1]} : vector<16x16xf32> to vector<16x8xf32>
    %405 = arith.addf %403, %404 : vector<16x8xf32>
    %406 = vector.extract_strided_slice %402 {offsets = [0, 0], sizes = [16, 8], strides = [1, 1]} : vector<16x16xf32> to vector<16x8xf32>
    %407 = vector.extract_strided_slice %402 {offsets = [0, 8], sizes = [16, 8], strides = [1, 1]} : vector<16x16xf32> to vector<16x8xf32>
    %408 = arith.addf %406, %407 : vector<16x8xf32>
    %cst_110 = arith.constant 1.000000e+00 : f32
    %409 = vector.broadcast %cst_110 : f32 to vector<16x8xf32>
    %410 = arith.maximumf %408, %409 : vector<16x8xf32>
    %411 = arith.divf %405, %410 : vector<16x8xf32>
    %cst_111 = arith.constant 2.000000e+00 : f32
    %412 = vector.broadcast %cst_111 : f32 to vector<16x8xf32>
    %413 = arith.mulf %412, %354 : vector<16x8xf32>
    %cst_112 = arith.constant 5.000000e+00 : f32
    %414 = vector.broadcast %cst_112 : f32 to vector<16x8xf32>
    %415 = arith.mulf %414, %411 : vector<16x8xf32>
    %416 = arith.addf %413, %415 : vector<16x8xf32>
    %c2_113 = arith.constant 2 : index
    %c0_114 = arith.constant 0 : index
    %c0_115 = arith.constant 0 : index
    %417 = vector.load %arg2[%c2_113, %c0_114, %c0_115] : memref<4x16x128xf32, #tpu.memory_space<vmem>>, vector<1x16x8xf32>
    %418 = vector.shape_cast %417 : vector<1x16x8xf32> to vector<16x8xf32>
    %419 = vector.shape_cast %416 : vector<16x8xf32> to vector<1x16x8xf32>
    tpu.vector_store %arg2[%c2_113, %c0_114, %c0_115], %419 {strides = array<i32>} : memref<4x16x128xf32, #tpu.memory_space<vmem>>, vector<1x16x8xf32>,
    %c2_116 = arith.constant 2 : index
    %c0_117 = arith.constant 0 : index
    %c8_118 = arith.constant 8 : index
    %420 = vector.load %arg2[%c2_116, %c0_117, %c8_118] : memref<4x16x128xf32, #tpu.memory_space<vmem>>, vector<1x16x8xf32>
    %421 = vector.shape_cast %420 : vector<1x16x8xf32> to vector<16x8xf32>
    %422 = vector.shape_cast %369 : vector<16x8xf32> to vector<1x16x8xf32>
    tpu.vector_store %arg2[%c2_116, %c0_117, %c8_118], %422 {strides = array<i32>} : memref<4x16x128xf32, #tpu.memory_space<vmem>>, vector<1x16x8xf32>,
    %c3 = arith.constant 3 : index
    %c0_119 = arith.constant 0 : index
    %c0_120 = arith.constant 0 : index
    %423 = vector.load %arg1[%c3, %c0_119, %c0_120] : memref<4x24x512xf32, #tpu.memory_space<vmem>>, vector<1x16x256xf32>
    %424 = vector.shape_cast %423 : vector<1x16x256xf32> to vector<16x256xf32>
    %c3_121 = arith.constant 3 : index
    %c0_122 = arith.constant 0 : index
    %c256_123 = arith.constant 256 : index
    %425 = vector.load %arg1[%c3_121, %c0_122, %c256_123] : memref<4x24x512xf32, #tpu.memory_space<vmem>>, vector<1x16x128xf32>
    %426 = vector.shape_cast %425 : vector<1x16x128xf32> to vector<16x128xf32>
    %c3_124 = arith.constant 3 : index
    %c0_125 = arith.constant 0 : index
    %c384_126 = arith.constant 384 : index
    %427 = vector.load %arg1[%c3_124, %c0_125, %c384_126] : memref<4x24x512xf32, #tpu.memory_space<vmem>>, vector<1x16x4xf32>
    %428 = vector.shape_cast %427 : vector<1x16x4xf32> to vector<16x4xf32>
    %c3_127 = arith.constant 3 : index
    %c16_128 = arith.constant 16 : index
    %c0_129 = arith.constant 0 : index
    %429 = vector.load %arg1[%c3_127, %c16_128, %c0_129] : memref<4x24x512xf32, #tpu.memory_space<vmem>>, vector<1x1x256xf32>
    %430 = vector.shape_cast %429 : vector<1x1x256xf32> to vector<1x256xf32>
    %c3_130 = arith.constant 3 : index
    %c17_131 = arith.constant 17 : index
    %c0_132 = arith.constant 0 : index
    %431 = vector.load %arg1[%c3_130, %c17_131, %c0_132] : memref<4x24x512xf32, #tpu.memory_space<vmem>>, vector<1x1x128xf32>
    %432 = vector.shape_cast %431 : vector<1x1x128xf32> to vector<1x128xf32>
    %c3_133 = arith.constant 3 : index
    %c18_134 = arith.constant 18 : index
    %c0_135 = arith.constant 0 : index
    %433 = vector.load %arg1[%c3_133, %c18_134, %c0_135] : memref<4x24x512xf32, #tpu.memory_space<vmem>>, vector<1x1x8xf32>
    %434 = vector.shape_cast %433 : vector<1x1x8xf32> to vector<1x8xf32>
    %cst_136 = arith.constant dense<0xFF800000> : vector<16xf32>
    %435 = vector.multi_reduction <maximumf>, %428, %cst_136 [1] : vector<16x4xf32> to vector<16xf32>
    %436 = vector.shape_cast %435 : vector<16xf32> to vector<16x1xf32>
    %437 = vector.broadcast %436 : vector<16x1xf32> to vector<16x4xf32>
    %438 = arith.subf %428, %437 : vector<16x4xf32>
    %439 = math.exp %438 : vector<16x4xf32>
    %cst_137 = arith.constant dense<0.000000e+00> : vector<16xf32>
    %440 = vector.multi_reduction <add>, %439, %cst_137 [1] : vector<16x4xf32> to vector<16xf32>
    %441 = vector.shape_cast %440 : vector<16xf32> to vector<16x1xf32>
    %442 = math.log %441 : vector<16x1xf32>
    %443 = vector.broadcast %442 : vector<16x1xf32> to vector<16x4xf32>
    %444 = arith.subf %438, %443 : vector<16x4xf32>
    %cst_138 = arith.constant 0.000000e+00 : f32
    %445 = vector.broadcast %cst_138 : f32 to vector<1x8xf32>
    %446 = arith.cmpf oeq, %434, %445 : vector<1x8xf32>
    %447 = vector.extract_strided_slice %444 {offsets = [0, 0], sizes = [16, 1], strides = [1, 1]} : vector<16x4xf32> to vector<16x1xf32>
    %cst_139 = arith.constant 0.000000e+00 : f32
    %448 = vector.shape_cast %446 : vector<1x8xi1> to vector<1x8xi1>
    %449 = vector.broadcast %448 : vector<1x8xi1> to vector<16x8xi1>
    %450 = vector.shape_cast %447 : vector<16x1xf32> to vector<16x1xf32>
    %451 = vector.broadcast %450 : vector<16x1xf32> to vector<16x8xf32>
    %452 = vector.broadcast %cst_139 : f32 to vector<16x8xf32>
    %453 = arith.select %449, %451, %452 : vector<16x8xi1>, vector<16x8xf32>
    %cst_140 = arith.constant 1.000000e+00 : f32
    %454 = vector.broadcast %cst_140 : f32 to vector<1x8xf32>
    %455 = arith.cmpf oeq, %434, %454 : vector<1x8xf32>
    %456 = vector.extract_strided_slice %444 {offsets = [0, 1], sizes = [16, 1], strides = [1, 1]} : vector<16x4xf32> to vector<16x1xf32>
    %cst_141 = arith.constant 0.000000e+00 : f32
    %457 = vector.shape_cast %455 : vector<1x8xi1> to vector<1x8xi1>
    %458 = vector.broadcast %457 : vector<1x8xi1> to vector<16x8xi1>
    %459 = vector.shape_cast %456 : vector<16x1xf32> to vector<16x1xf32>
    %460 = vector.broadcast %459 : vector<16x1xf32> to vector<16x8xf32>
    %461 = vector.broadcast %cst_141 : f32 to vector<16x8xf32>
    %462 = arith.select %458, %460, %461 : vector<16x8xi1>, vector<16x8xf32>
    %463 = arith.addf %453, %462 : vector<16x8xf32>
    %cst_142 = arith.constant 2.000000e+00 : f32
    %464 = vector.broadcast %cst_142 : f32 to vector<1x8xf32>
    %465 = arith.cmpf oeq, %434, %464 : vector<1x8xf32>
    %466 = vector.extract_strided_slice %444 {offsets = [0, 2], sizes = [16, 1], strides = [1, 1]} : vector<16x4xf32> to vector<16x1xf32>
    %cst_143 = arith.constant 0.000000e+00 : f32
    %467 = vector.shape_cast %465 : vector<1x8xi1> to vector<1x8xi1>
    %468 = vector.broadcast %467 : vector<1x8xi1> to vector<16x8xi1>
    %469 = vector.shape_cast %466 : vector<16x1xf32> to vector<16x1xf32>
    %470 = vector.broadcast %469 : vector<16x1xf32> to vector<16x8xf32>
    %471 = vector.broadcast %cst_143 : f32 to vector<16x8xf32>
    %472 = arith.select %468, %470, %471 : vector<16x8xi1>, vector<16x8xf32>
    %473 = arith.addf %463, %472 : vector<16x8xf32>
    %cst_144 = arith.constant 3.000000e+00 : f32
    %474 = vector.broadcast %cst_144 : f32 to vector<1x8xf32>
    %475 = arith.cmpf oeq, %434, %474 : vector<1x8xf32>
    %476 = vector.extract_strided_slice %444 {offsets = [0, 3], sizes = [16, 1], strides = [1, 1]} : vector<16x4xf32> to vector<16x1xf32>
    %cst_145 = arith.constant 0.000000e+00 : f32
    %477 = vector.shape_cast %475 : vector<1x8xi1> to vector<1x8xi1>
    %478 = vector.broadcast %477 : vector<1x8xi1> to vector<16x8xi1>
    %479 = vector.shape_cast %476 : vector<16x1xf32> to vector<16x1xf32>
    %480 = vector.broadcast %479 : vector<16x1xf32> to vector<16x8xf32>
    %481 = vector.broadcast %cst_145 : f32 to vector<16x8xf32>
    %482 = arith.select %478, %480, %481 : vector<16x8xi1>, vector<16x8xf32>
    %483 = arith.addf %473, %482 : vector<16x8xf32>
    %484 = math.exp %483 : vector<16x8xf32>
    %cst_146 = arith.constant 2.500000e-01 : f32
    %cst_147 = arith.constant 7.500000e-01 : f32
    %485 = vector.broadcast %cst_146 : f32 to vector<1x8xf32>
    %486 = vector.broadcast %cst_147 : f32 to vector<1x8xf32>
    %487 = arith.select %446, %485, %486 : vector<1x8xi1>, vector<1x8xf32>
    %cst_148 = arith.constant 1.000000e+00 : f32
    %488 = vector.broadcast %cst_148 : f32 to vector<16x8xf32>
    %489 = arith.subf %488, %484 : vector<16x8xf32>
    %cst_149 = arith.constant 0.000000e+00 : f32
    %490 = vector.broadcast %cst_149 : f32 to vector<1x8xf32>
    %491 = arith.subf %490, %487 : vector<1x8xf32>
    %492 = vector.broadcast %491 : vector<1x8xf32> to vector<16x8xf32>
    %493 = arith.mulf %492, %489 : vector<16x8xf32>
    %494 = arith.mulf %493, %489 : vector<16x8xf32>
    %495 = arith.mulf %494, %483 : vector<16x8xf32>
    %496 = vector.broadcast %432 : vector<1x128xf32> to vector<16x128xf32>
    %497 = arith.subf %496, %426 : vector<16x128xf32>
    %498 = math.absf %497 : vector<16x128xf32>
    %499 = vector.extract_strided_slice %498 {offsets = [0, 0], sizes = [16, 64], strides = [1, 1]} : vector<16x128xf32> to vector<16x64xf32>
    %500 = vector.extract_strided_slice %498 {offsets = [0, 64], sizes = [16, 64], strides = [1, 1]} : vector<16x128xf32> to vector<16x64xf32>
    %501 = arith.addf %499, %500 : vector<16x64xf32>
    %502 = vector.extract_strided_slice %501 {offsets = [0, 0], sizes = [16, 32], strides = [1, 1]} : vector<16x64xf32> to vector<16x32xf32>
    %503 = vector.extract_strided_slice %501 {offsets = [0, 32], sizes = [16, 32], strides = [1, 1]} : vector<16x64xf32> to vector<16x32xf32>
    %504 = arith.addf %502, %503 : vector<16x32xf32>
    %505 = vector.extract_strided_slice %504 {offsets = [0, 0], sizes = [16, 16], strides = [1, 1]} : vector<16x32xf32> to vector<16x16xf32>
    %506 = vector.extract_strided_slice %504 {offsets = [0, 16], sizes = [16, 16], strides = [1, 1]} : vector<16x32xf32> to vector<16x16xf32>
    %507 = arith.addf %505, %506 : vector<16x16xf32>
    %508 = vector.extract_strided_slice %507 {offsets = [0, 0], sizes = [16, 8], strides = [1, 1]} : vector<16x16xf32> to vector<16x8xf32>
    %509 = vector.extract_strided_slice %507 {offsets = [0, 8], sizes = [16, 8], strides = [1, 1]} : vector<16x16xf32> to vector<16x8xf32>
    %510 = arith.addf %508, %509 : vector<16x8xf32>
    %511 = vector.broadcast %430 : vector<1x256xf32> to vector<16x256xf32>
    %512 = arith.subf %424, %511 : vector<16x256xf32>
    %cst_150 = arith.constant 1.000000e+00 : f32
    %513 = vector.broadcast %cst_150 : f32 to vector<16x256xf32>
    %514 = arith.cmpf olt, %512, %513 : vector<16x256xf32>
    %515 = math.absf %512 : vector<16x256xf32>
    %cst_151 = arith.constant 0.000000e+00 : f32
    %516 = vector.broadcast %cst_151 : f32 to vector<16x256xf32>
    %517 = arith.select %514, %515, %516 : vector<16x256xi1>, vector<16x256xf32>
    %518 = arith.extui %514 : vector<16x256xi1> to vector<16x256xi32>
    %519 = arith.sitofp %518 : vector<16x256xi32> to vector<16x256xf32>
    %520 = vector.extract_strided_slice %517 {offsets = [0, 0], sizes = [16, 128], strides = [1, 1]} : vector<16x256xf32> to vector<16x128xf32>
    %521 = vector.extract_strided_slice %517 {offsets = [0, 128], sizes = [16, 128], strides = [1, 1]} : vector<16x256xf32> to vector<16x128xf32>
    %522 = arith.addf %520, %521 : vector<16x128xf32>
    %523 = vector.extract_strided_slice %519 {offsets = [0, 0], sizes = [16, 128], strides = [1, 1]} : vector<16x256xf32> to vector<16x128xf32>
    %524 = vector.extract_strided_slice %519 {offsets = [0, 128], sizes = [16, 128], strides = [1, 1]} : vector<16x256xf32> to vector<16x128xf32>
    %525 = arith.addf %523, %524 : vector<16x128xf32>
    %526 = vector.extract_strided_slice %522 {offsets = [0, 0], sizes = [16, 64], strides = [1, 1]} : vector<16x128xf32> to vector<16x64xf32>
    %527 = vector.extract_strided_slice %522 {offsets = [0, 64], sizes = [16, 64], strides = [1, 1]} : vector<16x128xf32> to vector<16x64xf32>
    %528 = arith.addf %526, %527 : vector<16x64xf32>
    %529 = vector.extract_strided_slice %525 {offsets = [0, 0], sizes = [16, 64], strides = [1, 1]} : vector<16x128xf32> to vector<16x64xf32>
    %530 = vector.extract_strided_slice %525 {offsets = [0, 64], sizes = [16, 64], strides = [1, 1]} : vector<16x128xf32> to vector<16x64xf32>
    %531 = arith.addf %529, %530 : vector<16x64xf32>
    %532 = vector.extract_strided_slice %528 {offsets = [0, 0], sizes = [16, 32], strides = [1, 1]} : vector<16x64xf32> to vector<16x32xf32>
    %533 = vector.extract_strided_slice %528 {offsets = [0, 32], sizes = [16, 32], strides = [1, 1]} : vector<16x64xf32> to vector<16x32xf32>
    %534 = arith.addf %532, %533 : vector<16x32xf32>
    %535 = vector.extract_strided_slice %531 {offsets = [0, 0], sizes = [16, 32], strides = [1, 1]} : vector<16x64xf32> to vector<16x32xf32>
    %536 = vector.extract_strided_slice %531 {offsets = [0, 32], sizes = [16, 32], strides = [1, 1]} : vector<16x64xf32> to vector<16x32xf32>
    %537 = arith.addf %535, %536 : vector<16x32xf32>
    %538 = vector.extract_strided_slice %534 {offsets = [0, 0], sizes = [16, 16], strides = [1, 1]} : vector<16x32xf32> to vector<16x16xf32>
    %539 = vector.extract_strided_slice %534 {offsets = [0, 16], sizes = [16, 16], strides = [1, 1]} : vector<16x32xf32> to vector<16x16xf32>
    %540 = arith.addf %538, %539 : vector<16x16xf32>
    %541 = vector.extract_strided_slice %537 {offsets = [0, 0], sizes = [16, 16], strides = [1, 1]} : vector<16x32xf32> to vector<16x16xf32>
    %542 = vector.extract_strided_slice %537 {offsets = [0, 16], sizes = [16, 16], strides = [1, 1]} : vector<16x32xf32> to vector<16x16xf32>
    %543 = arith.addf %541, %542 : vector<16x16xf32>
    %544 = vector.extract_strided_slice %540 {offsets = [0, 0], sizes = [16, 8], strides = [1, 1]} : vector<16x16xf32> to vector<16x8xf32>
    %545 = vector.extract_strided_slice %540 {offsets = [0, 8], sizes = [16, 8], strides = [1, 1]} : vector<16x16xf32> to vector<16x8xf32>
    %546 = arith.addf %544, %545 : vector<16x8xf32>
    %547 = vector.extract_strided_slice %543 {offsets = [0, 0], sizes = [16, 8], strides = [1, 1]} : vector<16x16xf32> to vector<16x8xf32>
    %548 = vector.extract_strided_slice %543 {offsets = [0, 8], sizes = [16, 8], strides = [1, 1]} : vector<16x16xf32> to vector<16x8xf32>
    %549 = arith.addf %547, %548 : vector<16x8xf32>
    %cst_152 = arith.constant 1.000000e+00 : f32
    %550 = vector.broadcast %cst_152 : f32 to vector<16x8xf32>
    %551 = arith.maximumf %549, %550 : vector<16x8xf32>
    %552 = arith.divf %546, %551 : vector<16x8xf32>
    %cst_153 = arith.constant 2.000000e+00 : f32
    %553 = vector.broadcast %cst_153 : f32 to vector<16x8xf32>
    %554 = arith.mulf %553, %495 : vector<16x8xf32>
    %cst_154 = arith.constant 5.000000e+00 : f32
    %555 = vector.broadcast %cst_154 : f32 to vector<16x8xf32>
    %556 = arith.mulf %555, %552 : vector<16x8xf32>
    %557 = arith.addf %554, %556 : vector<16x8xf32>
    %c3_155 = arith.constant 3 : index
    %c0_156 = arith.constant 0 : index
    %c0_157 = arith.constant 0 : index
    %558 = vector.load %arg2[%c3_155, %c0_156, %c0_157] : memref<4x16x128xf32, #tpu.memory_space<vmem>>, vector<1x16x8xf32>
    %559 = vector.shape_cast %558 : vector<1x16x8xf32> to vector<16x8xf32>
    %560 = vector.shape_cast %557 : vector<16x8xf32> to vector<1x16x8xf32>
    tpu.vector_store %arg2[%c3_155, %c0_156, %c0_157], %560 {strides = array<i32>} : memref<4x16x128xf32, #tpu.memory_space<vmem>>, vector<1x16x8xf32>,
    %c3_158 = arith.constant 3 : index
    %c0_159 = arith.constant 0 : index
    %c8_160 = arith.constant 8 : index
    %561 = vector.load %arg2[%c3_158, %c0_159, %c8_160] : memref<4x16x128xf32, #tpu.memory_space<vmem>>, vector<1x16x8xf32>
    %562 = vector.shape_cast %561 : vector<1x16x8xf32> to vector<16x8xf32>
    %563 = vector.shape_cast %510 : vector<16x8xf32> to vector<1x16x8xf32>
    tpu.vector_store %arg2[%c3_158, %c0_159, %c8_160], %563 {strides = array<i32>} : memref<4x16x128xf32, #tpu.memory_space<vmem>>, vector<1x16x8xf32>,
    return
  }
  func.func @transform_0(%arg0: i32) -> (i32, i32, i32) {
    %c0_i32 = arith.constant 0 : i32
    %c0_i32_0 = arith.constant 0 : i32
    %c0_i32_1 = arith.constant 0 : i32
    return %arg0, %c0_i32, %c0_i32_0 : i32, i32, i32
  }
  func.func @transform_1(%arg0: i32) -> (i32, i32, i32) {
    %c0_i32 = arith.constant 0 : i32
    %c0_i32_0 = arith.constant 0 : i32
    %c0_i32_1 = arith.constant 0 : i32
    return %arg0, %c0_i32, %c0_i32_0 : i32, i32, i32
  }
}

</mosaic_0001>

<llo_original>
// kernel: compute_cost_matrices.1
$region0: #{compute_cost_matrices.1}
  #allocation0 [shape = 'u32[]', space=smem, size = 0x4, offset = 0x4, fixed_abs, tag = 'smem constant byte address 0x4 - core index']
  #allocation1 [shape = 'u32[144,128]{1,0:T(1,128)}', space=vmem, size = 0x12000, scoped, tag = 'internal scratch']
  %s0 = inlined_call_operand.vmem [shape: f32[8,24,512], index: 0, kind: input, shape index: {}]
  %s1 = inlined_call_operand.vmem [shape: f32[8,16,128], index: 1, kind: output, shape index: {}]
  %s2 = sld [smem:[#allocation0]]
  $region37: #{compute_cost_matrices.1} parent=0
    _
  %s4 = ssub.s32 1, %s2
  %s5 = scalar_select 0, %s4, %s2
  loop: start=0, step=1, limit=4
  $region2: #{compute_cost_matrices.1} parent=0 // loop_pre_header
    _
  $region3: #{compute_cost_matrices.1} parent=0 // loop_header
    %s7 = sphi 0, %s11
    %p8 = scmp.ge.s32.totalorder %s7, 4
    %s17 = sphi 0, %s19
    %s20 = sphi 0, %s17
    %s21 = sphi 0, %s20
    %s37 = sphi 0, %s21
    %s43 = sphi 0, %s45
    %s46 = sphi 0, %s43
    %s47 = sphi 0, %s46
    %s63 = sphi 0, %s47
  $region4: #{compute_cost_matrices.1} parent=0 // loop_header_branch
    %10 = sbr.rel (%p8) target = $region8
  $region5: #{compute_cost_matrices.1} parent=0 // loop_body
    %s12 = ssub.s32 %s7, 1
    %s13 = ssub.s32 %s7, 2
    %s14 = sadd.s32 %s7, 1
    %s15 = ssub.s32 %s7, %s14
    %p16 = scmp.eq.s32.totalorder %s15, 0
    %s18 = sadd.s32 %s17, 1
    %s19 = scalar_select %p16, %s17, %s18
    %p22 = pneg %p16
    %p23 = scmp.eq.s32.totalorder %s7, 1
    %p24 = por %p22, %p23
    %p25 = scmp.ne.s32.totalorder %s17, %s20
    %p26 = scmp.eq.s32.totalorder %s7, 0
    %p27 = por %p25, %p26
    %p28 = scmp.ne.s32.totalorder %s17, %s20
    %p29 = scmp.eq.s32.totalorder %s12, 1
    %p30 = por %p28, %p29
    %p31 = scmp.ne.s32.totalorder %s20, %s21
    %p32 = scmp.eq.s32.totalorder %s12, 0
    %p33 = por %p31, %p32
    %p34 = scmp.ne.s32.totalorder %s20, %s21
    %p35 = scmp.eq.s32.totalorder %s13, 1
    %p36 = por %p34, %p35
    %p38 = scmp.ne.s32.totalorder %s21, %s37
    %p39 = scmp.eq.s32.totalorder %s13, 0
    %p40 = por %p38, %p39
    %s41 = ssub.s32 %s7, %s14
    %p42 = scmp.eq.s32.totalorder %s41, 0
    %s44 = sadd.s32 %s43, 1
    %s45 = scalar_select %p42, %s43, %s44
    %p48 = pneg %p42
    %p49 = scmp.eq.s32.totalorder %s7, 1
    %p50 = por %p48, %p49
    %p51 = scmp.ne.s32.totalorder %s43, %s46
    %p52 = scmp.eq.s32.totalorder %s7, 0
    %p53 = por %p51, %p52
    %p54 = scmp.ne.s32.totalorder %s43, %s46
    %p55 = scmp.eq.s32.totalorder %s12, 1
    %p56 = por %p54, %p55
    %p57 = scmp.ne.s32.totalorder %s46, %s47
    %p58 = scmp.eq.s32.totalorder %s12, 0
    %p59 = por %p57, %p58
    %p60 = scmp.ne.s32.totalorder %s46, %s47
    %p61 = scmp.eq.s32.totalorder %s13, 1
    %p62 = por %p60, %p61
    %p64 = scmp.ne.s32.totalorder %s47, %s63
    %p65 = scmp.eq.s32.totalorder %s13, 0
    %p66 = por %p64, %p65
    %p67 = scmp.le.s32.totalorder 1, %s7
    %p68 = scmp.lt.s32.totalorder %s7, 3
    %p69 = pnand %p67, %p68
    %p70 = pneg %p69
    // Predicated region
    $region9: #{compute_cost_matrices.1} parent=5 // pred_check
      _
    $region10: #{compute_cost_matrices.1} parent=5 // pred_check_branch
      %72 = sbr.rel (%p69) target = $region12
    $region11: #{compute_cost_matrices.1} parent=5 // pred_region
      %s73 = ssub.s32 %s7, 1
    $region12: #{compute_cost_matrices.1} parent=5 // pred_fallthru
      _
    %p74 = scmp.lt.s32.totalorder %s7, 2
    // Predicated region
    $region13: #{compute_cost_matrices.1} parent=5 // pred_check
      %p75 = pneg %p74
    $region14: #{compute_cost_matrices.1} parent=5 // pred_check_branch
      %77 = sbr.rel (%p75) target = $region16
    $region15: #{compute_cost_matrices.1} parent=5 // pred_region
      // Predicated region
      $region17: #{compute_cost_matrices.1} parent=15 // pred_check
        %p78 = pneg %p27
      $region18: #{compute_cost_matrices.1} parent=15 // pred_check_branch
        %80 = sbr.rel (%p78) target = $region20
      $region19: #{compute_cost_matrices.1} parent=15 // pred_region
        %s81 = smul.u32 4, %s7
        %p82 = scmp.lt.s32.totalorder %s81, 7
        %s83 = scalar_select %p82, %s81, 7
        %s84 = smul.addr %s83, 12
        %s85 = smul.addr %s84, 8
        %s86 = scalar_lea.vmem %s0, %s85
        %s87 = smul.u32 4, %s7
      $region20: #{compute_cost_matrices.1} parent=15 // pred_fallthru
        _
    $region16: #{compute_cost_matrices.1} parent=5 // pred_fallthru
      _
    %p88 = scmp.le.s32.totalorder 1, %s7
    %p89 = scmp.lt.s32.totalorder %s7, 3
    %p90 = pnand %p88, %p89
    %p91 = pneg %p90
    // Predicated region
    $region21: #{compute_cost_matrices.1} parent=5 // pred_check
      _
    $region22: #{compute_cost_matrices.1} parent=5 // pred_check_branch
      %93 = sbr.rel (%p90) target = $region24
    $region23: #{compute_cost_matrices.1} parent=5 // pred_region
      %s94 = ssub.s32 %s7, 1
      %s95 = smul.u32 4, %s12
      %p96 = scmp.lt.s32.totalorder %s95, 7
      %s97 = scalar_select %p96, %s95, 7
      %s98 = smul.addr %s97, 12
      %s99 = smul.addr %s98, 8
      %s100 = scalar_lea.vmem %s0, %s99
      %p101 = pneg %p33
      %p102 = pneg %p30
      %p103 = pneg %p59
      %p104 = pneg %p56
      %s105 = smul.u32 4, %s12
      %p106 = scmp.lt.s32.totalorder %s105, 7
      %s107 = scalar_select %p106, %s105, 7
      %s108 = smul.addr %s107, 2
      %s109 = smul.addr %s108, 8
      %s110 = scalar_lea.vmem %s1, %s109
      %s111 = smul.u32 4, %s12
      %p112 = scmp.lt.s32.totalorder %s111, 7
      %s113 = scalar_select %p112, %s111, 7
      %s114 = smul.addr %s113, 12
      %s115 = smul.addr %s114, 8
      %s116 = scalar_lea.vmem %s0, %s115
      %s117 = smul.u32 4, %s12
      %s118 = smul.u32 4, %s12
      %p119 = scmp.lt.s32.totalorder %s118, 7
      %s120 = scalar_select %p119, %s118, 7
      %s121 = smul.addr %s120, 2
      %s122 = smul.addr %s121, 8
      %s123 = scalar_lea.vmem %s1, %s122
      %s124 = smul.u32 4, %s12
      %v125 = vld [vmem:[%s116] sm:$0xff]
      %v126 = vld [vmem:[%s116 + $0x8] sm:$0xff]
      %v127 = vld [vmem:[%s116 + $0x20] sm:$0xff]
      %v128 = vld [vmem:[%s116 + $0x28] sm:$0xff]
      %v129 = vld [vmem:[%s116 + $0x10] sm:$0xff]
      %v130 = vld [vmem:[%s116 + $0x30] sm:$0xff]
      %v131 = vld [vmem:[%s116 + $0x18] sm:$0xff]
      %v132 = vld [vmem:[%s116 + $0x38] sm:$0xff]
      %s133 = scalar_lea.vmem %s116, 64
      %v134 = vld [vmem:[%s133] ss:$8 sm:$0x3]
      %v135 = vld [vmem:[%s116 + $0x41] ss:$0 sm:$0xff]
      %v136 = vld [vmem:[%s116 + $0x42] ss:$0 sm:$0xff]
      %vm137 = vcmask 31744
      %v138 = vsel %vm137, %v131, -inf
      %139 = vmax.xlane.f32.xlu0 %v138
      %v140 = vpop.xlane.xlu0 %139
      %v141 = vsel %vm137, %v132, -inf
      %142 = vmax.xlane.f32.xlu0 %v141
      %v143 = vpop.xlane.xlu0 %142
      %v144 = vsub.f32 %v131, %v140
      %v145 = vsub.f32 %v132, %v143
      %v146 = vmul.f32 %v144, 1.442695
      %v147 = vpow.pop %v146
      %v148 = vmul.f32 %v145, 1.442695
      %v149 = vpow.pop %v148
      %v150 = vsel %vm137, %v147, 0.0
      %151 = vadd.xlane.f32.xlu0 %v150
      %v152 = vpop.xlane.xlu0 %151
      %v153 = vsel %vm137, %v149, 0.0
      %154 = vadd.xlane.f32.xlu0 %v153
      %v155 = vpop.xlane.xlu0 %154
      %v156 = vlog2.pop %v152
      %v157 = vmul.f32 %v156, 0.6931472
      %v158 = vlog2.pop %v155
      %v159 = vmul.f32 %v158, 0.6931472
      %v160 = vsub.f32 %v144, %v157
      %v161 = vsub.f32 %v145, %v159
      %vm162 = vcmp.eq.f32.partialorder %v136, 0.0
      %v163 = vsel %vm162, 1, 0
      %vm164 = vcmp.eq.s32.totalorder %v163, 1
      %166 = vset.pattern.permute.xlu0 0
      %167 = vperm.xlu0 %166, %v160
      %v168 = vpop.permute.xlu0 %167
      %171 = vset.pattern.permute.xlu0 0
      %172 = vperm.xlu0 %171, %v161
      %v173 = vpop.permute.xlu0 %172
      %v175 = vsel %vm164, %v168, 0.0
      %v176 = vsel %vm164, %v173, 0.0
      %vm177 = vcmp.eq.f32.partialorder %v136, 1.0
      %v178 = vsel %vm177, 1, 0
      %vm179 = vcmp.eq.s32.totalorder %v178, 1
      %180 = vset.pattern.permute.xlu0 1
      %181 = vperm.xlu0 %180, %v160
      %v182 = vpop.permute.xlu0 %181
      %184 = vset.pattern.permute.xlu0 1
      %185 = vperm.xlu0 %184, %v161
      %v186 = vpop.permute.xlu0 %185
      %v188 = vsel %vm179, %v182, 0.0
      %v189 = vsel %vm179, %v186, 0.0
      %v190 = vadd.f32 %v175, %v188
      %v191 = vadd.f32 %v176, %v189
      %vm192 = vcmp.eq.f32.partialorder %v136, 2.0
      %v193 = vsel %vm192, 1, 0
      %vm194 = vcmp.eq.s32.totalorder %v193, 1
      %195 = vset.pattern.permute.xlu0 2
      %196 = vperm.xlu0 %195, %v160
      %v197 = vpop.permute.xlu0 %196
      %199 = vset.pattern.permute.xlu0 2
      %200 = vperm.xlu0 %199, %v161
      %v201 = vpop.permute.xlu0 %200
      %v203 = vsel %vm194, %v197, 0.0
      %v204 = vsel %vm194, %v201, 0.0
      %v205 = vadd.f32 %v190, %v203
      %v206 = vadd.f32 %v191, %v204
      %vm207 = vcmp.eq.f32.partialorder %v136, 3.0
      %v208 = vsel %vm207, 1, 0
      %vm209 = vcmp.eq.s32.totalorder %v208, 1
      %210 = vset.pattern.permute.xlu0 3
      %211 = vperm.xlu0 %210, %v160
      %v212 = vpop.permute.xlu0 %211
      %214 = vset.pattern.permute.xlu0 3
      %215 = vperm.xlu0 %214, %v161
      %v216 = vpop.permute.xlu0 %215
      %v218 = vsel %vm209, %v212, 0.0
      %v219 = vsel %vm209, %v216, 0.0
      %v220 = vadd.f32 %v205, %v218
      %v221 = vadd.f32 %v206, %v219
      %v222 = vmul.f32 %v220, 1.442695
      %v223 = vpow.pop %v222
      %v224 = vmul.f32 %v221, 1.442695
      %v225 = vpow.pop %v224
      %v226 = vsel %vm162, 0.25, 0.75
      %v227 = vsub.f32 1.0, %v223
      %v228 = vsub.f32 1.0, %v225
      %v229 = vsub.f32 0.0, %v226
      %v230 = vmul.f32 %v229, %v227
      %v231 = vmul.f32 %v229, %v228
      %v232 = vmul.f32 %v230, %v227
      %v233 = vmul.f32 %v231, %v228
      %v234 = vmul.f32 %v232, %v220
      %v235 = vmul.f32 %v233, %v221
      %v236 = vsub.f32 %v135, %v129
      %v237 = vsub.f32 %v135, %v130
      %v238 = vand.u32 2147483647, %v236
      %v239 = vand.u32 2147483647, %v237
      %242 = vrot.lane.b32.xlu0 %v238, 64
      %v243 = vpop.permute.xlu0 %242
      %244 = vrot.lane.b32.xlu0 %v239, 64
      %v245 = vpop.permute.xlu0 %244
      %v248 = vadd.f32 %v238, %v243
      %v249 = vadd.f32 %v239, %v245
      %252 = vrot.lane.b32.xlu0 %v248, 96
      %v253 = vpop.permute.xlu0 %252
      %254 = vrot.lane.b32.xlu0 %v249, 96
      %v255 = vpop.permute.xlu0 %254
      %v258 = vadd.f32 %v248, %v253
      %v259 = vadd.f32 %v249, %v255
      %262 = vrot.lane.b32.xlu0 %v258, 112
      %v263 = vpop.permute.xlu0 %262
      %264 = vrot.lane.b32.xlu0 %v259, 112
      %v265 = vpop.permute.xlu0 %264
      %v268 = vadd.f32 %v258, %v263
      %v269 = vadd.f32 %v259, %v265
      %272 = vrot.lane.b32.xlu0 %v268, 120
      %v273 = vpop.permute.xlu0 %272
      %274 = vrot.lane.b32.xlu0 %v269, 120
      %v275 = vpop.permute.xlu0 %274
      %v278 = vadd.f32 %v268, %v273
      %v279 = vadd.f32 %v269, %v275
      %v281 = vlaneseq
      %v282 = vshrl.u32 %v281, 7
      %v283 = vsub.s32 0, %v282
      %v284 = vrot.slane %v134, %v283
      %v285 = vlaneseq
      %v286 = vshrl.u32 %v285, 7
      %v287 = vsub.s32 1, %v286
      %v288 = vrot.slane %v134, %v287
      %v291 = vsub.f32 %v125, %v284
      %v292 = vsub.f32 %v126, %v288
      %v293 = vsub.f32 %v127, %v284
      %v294 = vsub.f32 %v128, %v288
      %vm295 = vcmp.lt.f32.partialorder %v291, 1.0
      %vm296 = vcmp.lt.f32.partialorder %v292, 1.0
      %vm297 = vcmp.lt.f32.partialorder %v293, 1.0
      %vm298 = vcmp.lt.f32.partialorder %v294, 1.0
      %v299 = vand.u32 2147483647, %v291
      %v300 = vand.u32 2147483647, %v292
      %v301 = vand.u32 2147483647, %v293
      %v302 = vand.u32 2147483647, %v294
      %v303 = vsel %vm295, %v299, 0.0
      %v304 = vsel %vm296, %v300, 0.0
      %v305 = vsel %vm297, %v301, 0.0
      %v306 = vsel %vm298, %v302, 0.0
      %v307 = vsel %vm295, 1, 0
      %v308 = vsel %vm296, 1, 0
      %v309 = vsel %vm297, 1, 0
      %v310 = vsel %vm298, 1, 0
      %v311 = vcvt.s32.f32 %v307
      %v312 = vcvt.s32.f32 %v308
      %v313 = vcvt.s32.f32 %v309
      %v314 = vcvt.s32.f32 %v310
      %v315 = vadd.f32 %v303, %v304
      %v316 = vadd.f32 %v305, %v306
      %v317 = vadd.f32 %v311, %v312
      %v318 = vadd.f32 %v313, %v314
      %321 = vrot.lane.b32.xlu0 %v315, 64
      %v322 = vpop.permute.xlu0 %321
      %323 = vrot.lane.b32.xlu0 %v316, 64
      %v324 = vpop.permute.xlu0 %323
      %v327 = vadd.f32 %v315, %v322
      %v328 = vadd.f32 %v316, %v324
      %331 = vrot.lane.b32.xlu0 %v317, 64
      %v332 = vpop.permute.xlu0 %331
      %333 = vrot.lane.b32.xlu0 %v318, 64
      %v334 = vpop.permute.xlu0 %333
      %v337 = vadd.f32 %v317, %v332
      %v338 = vadd.f32 %v318, %v334
      %341 = vrot.lane.b32.xlu0 %v327, 96
      %v342 = vpop.permute.xlu0 %341
      %343 = vrot.lane.b32.xlu0 %v328, 96
      %v344 = vpop.permute.xlu0 %343
      %v347 = vadd.f32 %v327, %v342
      %v348 = vadd.f32 %v328, %v344
      %351 = vrot.lane.b32.xlu0 %v337, 96
      %v352 = vpop.permute.xlu0 %351
      %353 = vrot.lane.b32.xlu0 %v338, 96
      %v354 = vpop.permute.xlu0 %353
      %v357 = vadd.f32 %v337, %v352
      %v358 = vadd.f32 %v338, %v354
      %361 = vrot.lane.b32.xlu0 %v347, 112
      %v362 = vpop.permute.xlu0 %361
      %363 = vrot.lane.b32.xlu0 %v348, 112
      %v364 = vpop.permute.xlu0 %363
      %v367 = vadd.f32 %v347, %v362
      %v368 = vadd.f32 %v348, %v364
      %371 = vrot.lane.b32.xlu0 %v357, 112
      %v372 = vpop.permute.xlu0 %371
      %373 = vrot.lane.b32.xlu0 %v358, 112
      %v374 = vpop.permute.xlu0 %373
      %v377 = vadd.f32 %v357, %v372
      %v378 = vadd.f32 %v358, %v374
      %381 = vrot.lane.b32.xlu0 %v367, 120
      %v382 = vpop.permute.xlu0 %381
      %383 = vrot.lane.b32.xlu0 %v368, 120
      %v384 = vpop.permute.xlu0 %383
      %v387 = vadd.f32 %v367, %v382
      %v388 = vadd.f32 %v368, %v384
      %391 = vrot.lane.b32.xlu0 %v377, 120
      %v392 = vpop.permute.xlu0 %391
      %393 = vrot.lane.b32.xlu0 %v378, 120
      %v394 = vpop.permute.xlu0 %393
      %v397 = vadd.f32 %v377, %v392
      %v398 = vadd.f32 %v378, %v394
      %v399 = vmax.f32 %v397, 1.0
      %v400 = vmax.f32 %v398, 1.0
      %v401 = vrcp.pop %v399
      %v402 = vmul.f32 %v387, %v401
      %v403 = vrcp.pop %v400
      %v404 = vmul.f32 %v388, %v403
      %v405 = vmul.f32 %v234, 2.0
      %v406 = vmul.f32 %v235, 2.0
      %v407 = vmul.f32 %v402, 5.0
      %v408 = vmul.f32 %v404, 5.0
      %v409 = vadd.f32 %v405, %v407
      %v410 = vadd.f32 %v406, %v408
      %vm411 = vcmask 64512
      %412 = vst.msk [vmem:[%s123] sm:$0xff] %vm411, %v409
      %413 = vst.msk [vmem:[%s123 + $0x8] sm:$0xff] %vm411, %v410
      %416 = vrot.lane.b32.xlu0 %v278, 8
      %v417 = vpop.permute.xlu0 %416
      %418 = vrot.lane.b32.xlu0 %v279, 8
      %v419 = vpop.permute.xlu0 %418
      %vm422 = vcmask 130112
      %423 = vst.msk [vmem:[%s123] sm:$0xff] %vm422, %v417
      %424 = vst.msk [vmem:[%s123 + $0x8] sm:$0xff] %vm422, %v419
      %s425 = scalar_lea.vmem %s116, 96
      %v426 = vld [vmem:[%s425] sm:$0xff]
      %v427 = vld [vmem:[%s425 + $0x8] sm:$0xff]
      %v428 = vld [vmem:[%s425 + $0x20] sm:$0xff]
      %v429 = vld [vmem:[%s425 + $0x28] sm:$0xff]
      %v430 = vld [vmem:[%s425 + $0x10] sm:$0xff]
      %v431 = vld [vmem:[%s425 + $0x30] sm:$0xff]
      %v432 = vld [vmem:[%s425 + $0x18] sm:$0xff]
      %v433 = vld [vmem:[%s425 + $0x38] sm:$0xff]
      %s434 = scalar_lea.vmem %s425, 64
      %v435 = vld [vmem:[%s434] ss:$8 sm:$0x3]
      %v436 = vld [vmem:[%s425 + $0x41] ss:$0 sm:$0xff]
      %v437 = vld [vmem:[%s425 + $0x42] ss:$0 sm:$0xff]
      %v438 = vsel %vm137, %v432, -inf
      %439 = vmax.xlane.f32.xlu0 %v438
      %v440 = vpop.xlane.xlu0 %439
      %v441 = vsel %vm137, %v433, -inf
      %442 = vmax.xlane.f32.xlu0 %v441
      %v443 = vpop.xlane.xlu0 %442
      %v444 = vsub.f32 %v432, %v440
      %v445 = vsub.f32 %v433, %v443
      %v446 = vmul.f32 %v444, 1.442695
      %v447 = vpow.pop %v446
      %v448 = vmul.f32 %v445, 1.442695
      %v449 = vpow.pop %v448
      %v450 = vsel %vm137, %v447, 0.0
      %451 = vadd.xlane.f32.xlu0 %v450
      %v452 = vpop.xlane.xlu0 %451
      %v453 = vsel %vm137, %v449, 0.0
      %454 = vadd.xlane.f32.xlu0 %v453
      %v455 = vpop.xlane.xlu0 %454
      %v456 = vlog2.pop %v452
      %v457 = vmul.f32 %v456, 0.6931472
      %v458 = vlog2.pop %v455
      %v459 = vmul.f32 %v458, 0.6931472
      %v460 = vsub.f32 %v444, %v457
      %v461 = vsub.f32 %v445, %v459
      %vm462 = vcmp.eq.f32.partialorder %v437, 0.0
      %v463 = vsel %vm462, 1, 0
      %vm464 = vcmp.eq.s32.totalorder %v463, 1
      %466 = vset.pattern.permute.xlu0 0
      %467 = vperm.xlu0 %466, %v460
      %v468 = vpop.permute.xlu0 %467
      %471 = vset.pattern.permute.xlu0 0
      %472 = vperm.xlu0 %471, %v461
      %v473 = vpop.permute.xlu0 %472
      %v475 = vsel %vm464, %v468, 0.0
      %v476 = vsel %vm464, %v473, 0.0
      %vm477 = vcmp.eq.f32.partialorder %v437, 1.0
      %v478 = vsel %vm477, 1, 0
      %vm479 = vcmp.eq.s32.totalorder %v478, 1
      %480 = vset.pattern.permute.xlu0 1
      %481 = vperm.xlu0 %480, %v460
      %v482 = vpop.permute.xlu0 %481
      %484 = vset.pattern.permute.xlu0 1
      %485 = vperm.xlu0 %484, %v461
      %v486 = vpop.permute.xlu0 %485
      %v488 = vsel %vm479, %v482, 0.0
      %v489 = vsel %vm479, %v486, 0.0
      %v490 = vadd.f32 %v475, %v488
      %v491 = vadd.f32 %v476, %v489
      %vm492 = vcmp.eq.f32.partialorder %v437, 2.0
      %v493 = vsel %vm492, 1, 0
      %vm494 = vcmp.eq.s32.totalorder %v493, 1
      %495 = vset.pattern.permute.xlu0 2
      %496 = vperm.xlu0 %495, %v460
      %v497 = vpop.permute.xlu0 %496
      %499 = vset.pattern.permute.xlu0 2
      %500 = vperm.xlu0 %499, %v461
      %v501 = vpop.permute.xlu0 %500
      %v503 = vsel %vm494, %v497, 0.0
      %v504 = vsel %vm494, %v501, 0.0
      %v505 = vadd.f32 %v490, %v503
      %v506 = vadd.f32 %v491, %v504
      %vm507 = vcmp.eq.f32.partialorder %v437, 3.0
      %v508 = vsel %vm507, 1, 0
      %vm509 = vcmp.eq.s32.totalorder %v508, 1
      %510 = vset.pattern.permute.xlu0 3
      %511 = vperm.xlu0 %510, %v460
      %v512 = vpop.permute.xlu0 %511
      %514 = vset.pattern.permute.xlu0 3
      %515 = vperm.xlu0 %514, %v461
      %v516 = vpop.permute.xlu0 %515
      %v518 = vsel %vm509, %v512, 0.0
      %v519 = vsel %vm509, %v516, 0.0
      %v520 = vadd.f32 %v505, %v518
      %v521 = vadd.f32 %v506, %v519
      %v522 = vmul.f32 %v520, 1.442695
      %v523 = vpow.pop %v522
      %v524 = vmul.f32 %v521, 1.442695
      %v525 = vpow.pop %v524
      %v526 = vsel %vm462, 0.25, 0.75
      %v527 = vsub.f32 1.0, %v523
      %v528 = vsub.f32 1.0, %v525
      %v529 = vsub.f32 0.0, %v526
      %v530 = vmul.f32 %v529, %v527
      %v531 = vmul.f32 %v529, %v528
      %v532 = vmul.f32 %v530, %v527
      %v533 = vmul.f32 %v531, %v528
      %v534 = vmul.f32 %v532, %v520
      %v535 = vmul.f32 %v533, %v521
      %v536 = vsub.f32 %v436, %v430
      %v537 = vsub.f32 %v436, %v431
      %v538 = vand.u32 2147483647, %v536
      %v539 = vand.u32 2147483647, %v537
      %542 = vrot.lane.b32.xlu0 %v538, 64
      %v543 = vpop.permute.xlu0 %542
      %544 = vrot.lane.b32.xlu0 %v539, 64
      %v545 = vpop.permute.xlu0 %544
      %v548 = vadd.f32 %v538, %v543
      %v549 = vadd.f32 %v539, %v545
      %552 = vrot.lane.b32.xlu0 %v548, 96
      %v553 = vpop.permute.xlu0 %552
      %554 = vrot.lane.b32.xlu0 %v549, 96
      %v555 = vpop.permute.xlu0 %554
      %v558 = vadd.f32 %v548, %v553
      %v559 = vadd.f32 %v549, %v555
      %562 = vrot.lane.b32.xlu0 %v558, 112
      %v563 = vpop.permute.xlu0 %562
      %564 = vrot.lane.b32.xlu0 %v559, 112
      %v565 = vpop.permute.xlu0 %564
      %v568 = vadd.f32 %v558, %v563
      %v569 = vadd.f32 %v559, %v565
      %572 = vrot.lane.b32.xlu0 %v568, 120
      %v573 = vpop.permute.xlu0 %572
      %574 = vrot.lane.b32.xlu0 %v569, 120
      %v575 = vpop.permute.xlu0 %574
      %v578 = vadd.f32 %v568, %v573
      %v579 = vadd.f32 %v569, %v575
      %v581 = vlaneseq
      %v582 = vshrl.u32 %v581, 7
      %v583 = vsub.s32 0, %v582
      %v584 = vrot.slane %v435, %v583
      %v585 = vlaneseq
      %v586 = vshrl.u32 %v585, 7
      %v587 = vsub.s32 1, %v586
      %v588 = vrot.slane %v435, %v587
      %v591 = vsub.f32 %v426, %v584
      %v592 = vsub.f32 %v427, %v588
      %v593 = vsub.f32 %v428, %v584
      %v594 = vsub.f32 %v429, %v588
      %vm595 = vcmp.lt.f32.partialorder %v591, 1.0
      %vm596 = vcmp.lt.f32.partialorder %v592, 1.0
      %vm597 = vcmp.lt.f32.partialorder %v593, 1.0
      %vm598 = vcmp.lt.f32.partialorder %v594, 1.0
      %v599 = vand.u32 2147483647, %v591
      %v600 = vand.u32 2147483647, %v592
      %v601 = vand.u32 2147483647, %v593
      %v602 = vand.u32 2147483647, %v594
      %v603 = vsel %vm595, %v599, 0.0
      %v604 = vsel %vm596, %v600, 0.0
      %v605 = vsel %vm597, %v601, 0.0
      %v606 = vsel %vm598, %v602, 0.0
      %v607 = vsel %vm595, 1, 0
      %v608 = vsel %vm596, 1, 0
      %v609 = vsel %vm597, 1, 0
      %v610 = vsel %vm598, 1, 0
      %v611 = vcvt.s32.f32 %v607
      %v612 = vcvt.s32.f32 %v608
      %v613 = vcvt.s32.f32 %v609
      %v614 = vcvt.s32.f32 %v610
      %v615 = vadd.f32 %v603, %v604
      %v616 = vadd.f32 %v605, %v606
      %v617 = vadd.f32 %v611, %v612
      %v618 = vadd.f32 %v613, %v614
      %621 = vrot.lane.b32.xlu0 %v615, 64
      %v622 = vpop.permute.xlu0 %621
      %623 = vrot.lane.b32.xlu0 %v616, 64
      %v624 = vpop.permute.xlu0 %623
      %v627 = vadd.f32 %v615, %v622
      %v628 = vadd.f32 %v616, %v624
      %631 = vrot.lane.b32.xlu0 %v617, 64
      %v632 = vpop.permute.xlu0 %631
      %633 = vrot.lane.b32.xlu0 %v618, 64
      %v634 = vpop.permute.xlu0 %633
      %v637 = vadd.f32 %v617, %v632
      %v638 = vadd.f32 %v618, %v634
      %641 = vrot.lane.b32.xlu0 %v627, 96
      %v642 = vpop.permute.xlu0 %641
      %643 = vrot.lane.b32.xlu0 %v628, 96
      %v644 = vpop.permute.xlu0 %643
      %v647 = vadd.f32 %v627, %v642
      %v648 = vadd.f32 %v628, %v644
      %651 = vrot.lane.b32.xlu0 %v637, 96
      %v652 = vpop.permute.xlu0 %651
      %653 = vrot.lane.b32.xlu0 %v638, 96
      %v654 = vpop.permute.xlu0 %653
      %v657 = vadd.f32 %v637, %v652
      %v658 = vadd.f32 %v638, %v654
      %661 = vrot.lane.b32.xlu0 %v647, 112
      %v662 = vpop.permute.xlu0 %661
      %663 = vrot.lane.b32.xlu0 %v648, 112
      %v664 = vpop.permute.xlu0 %663
      %v667 = vadd.f32 %v647, %v662
      %v668 = vadd.f32 %v648, %v664
      %671 = vrot.lane.b32.xlu0 %v657, 112
      %v672 = vpop.permute.xlu0 %671
      %673 = vrot.lane.b32.xlu0 %v658, 112
      %v674 = vpop.permute.xlu0 %673
      %v677 = vadd.f32 %v657, %v672
      %v678 = vadd.f32 %v658, %v674
      %681 = vrot.lane.b32.xlu0 %v667, 120
      %v682 = vpop.permute.xlu0 %681
      %683 = vrot.lane.b32.xlu0 %v668, 120
      %v684 = vpop.permute.xlu0 %683
      %v687 = vadd.f32 %v667, %v682
      %v688 = vadd.f32 %v668, %v684
      %691 = vrot.lane.b32.xlu0 %v677, 120
      %v692 = vpop.permute.xlu0 %691
      %693 = vrot.lane.b32.xlu0 %v678, 120
      %v694 = vpop.permute.xlu0 %693
      %v697 = vadd.f32 %v677, %v692
      %v698 = vadd.f32 %v678, %v694
      %v699 = vmax.f32 %v697, 1.0
      %v700 = vmax.f32 %v698, 1.0
      %v701 = vrcp.pop %v699
      %v702 = vmul.f32 %v687, %v701
      %v703 = vrcp.pop %v700
      %v704 = vmul.f32 %v688, %v703
      %v705 = vmul.f32 %v534, 2.0
      %v706 = vmul.f32 %v535, 2.0
      %v707 = vmul.f32 %v702, 5.0
      %v708 = vmul.f32 %v704, 5.0
      %v709 = vadd.f32 %v705, %v707
      %v710 = vadd.f32 %v706, %v708
      %s711 = scalar_lea.vmem %s123, 16
      %712 = vst.msk [vmem:[%s711] sm:$0xff] %vm411, %v709
      %713 = vst.msk [vmem:[%s711 + $0x8] sm:$0xff] %vm411, %v710
      %716 = vrot.lane.b32.xlu0 %v578, 8
      %v717 = vpop.permute.xlu0 %716
      %718 = vrot.lane.b32.xlu0 %v579, 8
      %v719 = vpop.permute.xlu0 %718
      %722 = vst.msk [vmem:[%s711] sm:$0xff] %vm422, %v717
      %723 = vst.msk [vmem:[%s711 + $0x8] sm:$0xff] %vm422, %v719
      %s724 = scalar_lea.vmem %s116, 192
      %v725 = vld [vmem:[%s724] sm:$0xff]
      %v726 = vld [vmem:[%s724 + $0x8] sm:$0xff]
      %v727 = vld [vmem:[%s724 + $0x20] sm:$0xff]
      %v728 = vld [vmem:[%s724 + $0x28] sm:$0xff]
      %v729 = vld [vmem:[%s724 + $0x10] sm:$0xff]
      %v730 = vld [vmem:[%s724 + $0x30] sm:$0xff]
      %v731 = vld [vmem:[%s724 + $0x18] sm:$0xff]
      %v732 = vld [vmem:[%s724 + $0x38] sm:$0xff]
      %s733 = scalar_lea.vmem %s724, 64
      %v734 = vld [vmem:[%s733] ss:$8 sm:$0x3]
      %v735 = vld [vmem:[%s724 + $0x41] ss:$0 sm:$0xff]
      %v736 = vld [vmem:[%s724 + $0x42] ss:$0 sm:$0xff]
      %v737 = vsel %vm137, %v731, -inf
      %738 = vmax.xlane.f32.xlu0 %v737
      %v739 = vpop.xlane.xlu0 %738
      %v740 = vsel %vm137, %v732, -inf
      %741 = vmax.xlane.f32.xlu0 %v740
      %v742 = vpop.xlane.xlu0 %741
      %v743 = vsub.f32 %v731, %v739
      %v744 = vsub.f32 %v732, %v742
      %v745 = vmul.f32 %v743, 1.442695
      %v746 = vpow.pop %v745
      %v747 = vmul.f32 %v744, 1.442695
      %v748 = vpow.pop %v747
      %v749 = vsel %vm137, %v746, 0.0
      %750 = vadd.xlane.f32.xlu0 %v749
      %v751 = vpop.xlane.xlu0 %750
      %v752 = vsel %vm137, %v748, 0.0
      %753 = vadd.xlane.f32.xlu0 %v752
      %v754 = vpop.xlane.xlu0 %753
      %v755 = vlog2.pop %v751
      %v756 = vmul.f32 %v755, 0.6931472
      %v757 = vlog2.pop %v754
      %v758 = vmul.f32 %v757, 0.6931472
      %v759 = vsub.f32 %v743, %v756
      %v760 = vsub.f32 %v744, %v758
      %vm761 = vcmp.eq.f32.partialorder %v736, 0.0
      %v762 = vsel %vm761, 1, 0
      %vm763 = vcmp.eq.s32.totalorder %v762, 1
      %765 = vset.pattern.permute.xlu0 0
      %766 = vperm.xlu0 %765, %v759
      %v767 = vpop.permute.xlu0 %766
      %770 = vset.pattern.permute.xlu0 0
      %771 = vperm.xlu0 %770, %v760
      %v772 = vpop.permute.xlu0 %771
      %v774 = vsel %vm763, %v767, 0.0
      %v775 = vsel %vm763, %v772, 0.0
      %vm776 = vcmp.eq.f32.partialorder %v736, 1.0
      %v777 = vsel %vm776, 1, 0
      %vm778 = vcmp.eq.s32.totalorder %v777, 1
      %779 = vset.pattern.permute.xlu0 1
      %780 = vperm.xlu0 %779, %v759
      %v781 = vpop.permute.xlu0 %780
      %783 = vset.pattern.permute.xlu0 1
      %784 = vperm.xlu0 %783, %v760
      %v785 = vpop.permute.xlu0 %784
      %v787 = vsel %vm778, %v781, 0.0
      %v788 = vsel %vm778, %v785, 0.0
      %v789 = vadd.f32 %v774, %v787
      %v790 = vadd.f32 %v775, %v788
      %vm791 = vcmp.eq.f32.partialorder %v736, 2.0
      %v792 = vsel %vm791, 1, 0
      %vm793 = vcmp.eq.s32.totalorder %v792, 1
      %794 = vset.pattern.permute.xlu0 2
      %795 = vperm.xlu0 %794, %v759
      %v796 = vpop.permute.xlu0 %795
      %798 = vset.pattern.permute.xlu0 2
      %799 = vperm.xlu0 %798, %v760
      %v800 = vpop.permute.xlu0 %799
      %v802 = vsel %vm793, %v796, 0.0
      %v803 = vsel %vm793, %v800, 0.0
      %v804 = vadd.f32 %v789, %v802
      %v805 = vadd.f32 %v790, %v803
      %vm806 = vcmp.eq.f32.partialorder %v736, 3.0
      %v807 = vsel %vm806, 1, 0
      %vm808 = vcmp.eq.s32.totalorder %v807, 1
      %809 = vset.pattern.permute.xlu0 3
      %810 = vperm.xlu0 %809, %v759
      %v811 = vpop.permute.xlu0 %810
      %813 = vset.pattern.permute.xlu0 3
      %814 = vperm.xlu0 %813, %v760
      %v815 = vpop.permute.xlu0 %814
      %v817 = vsel %vm808, %v811, 0.0
      %v818 = vsel %vm808, %v815, 0.0
      %v819 = vadd.f32 %v804, %v817
      %v820 = vadd.f32 %v805, %v818
      %v821 = vmul.f32 %v819, 1.442695
      %v822 = vpow.pop %v821
      %v823 = vmul.f32 %v820, 1.442695
      %v824 = vpow.pop %v823
      %v825 = vsel %vm761, 0.25, 0.75
      %v826 = vsub.f32 1.0, %v822
      %v827 = vsub.f32 1.0, %v824
      %v828 = vsub.f32 0.0, %v825
      %v829 = vmul.f32 %v828, %v826
      %v830 = vmul.f32 %v828, %v827
      %v831 = vmul.f32 %v829, %v826
      %v832 = vmul.f32 %v830, %v827
      %v833 = vmul.f32 %v831, %v819
      %v834 = vmul.f32 %v832, %v820
      %v835 = vsub.f32 %v735, %v729
      %v836 = vsub.f32 %v735, %v730
      %v837 = vand.u32 2147483647, %v835
      %v838 = vand.u32 2147483647, %v836
      %841 = vrot.lane.b32.xlu0 %v837, 64
      %v842 = vpop.permute.xlu0 %841
      %843 = vrot.lane.b32.xlu0 %v838, 64
      %v844 = vpop.permute.xlu0 %843
      %v847 = vadd.f32 %v837, %v842
      %v848 = vadd.f32 %v838, %v844
      %851 = vrot.lane.b32.xlu0 %v847, 96
      %v852 = vpop.permute.xlu0 %851
      %853 = vrot.lane.b32.xlu0 %v848, 96
      %v854 = vpop.permute.xlu0 %853
      %v857 = vadd.f32 %v847, %v852
      %v858 = vadd.f32 %v848, %v854
      %861 = vrot.lane.b32.xlu0 %v857, 112
      %v862 = vpop.permute.xlu0 %861
      %863 = vrot.lane.b32.xlu0 %v858, 112
      %v864 = vpop.permute.xlu0 %863
      %v867 = vadd.f32 %v857, %v862
      %v868 = vadd.f32 %v858, %v864
      %871 = vrot.lane.b32.xlu0 %v867, 120
      %v872 = vpop.permute.xlu0 %871
      %873 = vrot.lane.b32.xlu0 %v868, 120
      %v874 = vpop.permute.xlu0 %873
      %v877 = vadd.f32 %v867, %v872
      %v878 = vadd.f32 %v868, %v874
      %v880 = vlaneseq
      %v881 = vshrl.u32 %v880, 7
      %v882 = vsub.s32 0, %v881
      %v883 = vrot.slane %v734, %v882
      %v884 = vlaneseq
      %v885 = vshrl.u32 %v884, 7
      %v886 = vsub.s32 1, %v885
      %v887 = vrot.slane %v734, %v886
      %v890 = vsub.f32 %v725, %v883
      %v891 = vsub.f32 %v726, %v887
      %v892 = vsub.f32 %v727, %v883
      %v893 = vsub.f32 %v728, %v887
      %vm894 = vcmp.lt.f32.partialorder %v890, 1.0
      %vm895 = vcmp.lt.f32.partialorder %v891, 1.0
      %vm896 = vcmp.lt.f32.partialorder %v892, 1.0
      %vm897 = vcmp.lt.f32.partialorder %v893, 1.0
      %v898 = vand.u32 2147483647, %v890
      %v899 = vand.u32 2147483647, %v891
      %v900 = vand.u32 2147483647, %v892
      %v901 = vand.u32 2147483647, %v893
      %v902 = vsel %vm894, %v898, 0.0
      %v903 = vsel %vm895, %v899, 0.0
      %v904 = vsel %vm896, %v900, 0.0
      %v905 = vsel %vm897, %v901, 0.0
      %v906 = vsel %vm894, 1, 0
      %v907 = vsel %vm895, 1, 0
      %v908 = vsel %vm896, 1, 0
      %v909 = vsel %vm897, 1, 0
      %v910 = vcvt.s32.f32 %v906
      %v911 = vcvt.s32.f32 %v907
      %v912 = vcvt.s32.f32 %v908
      %v913 = vcvt.s32.f32 %v909
      %v914 = vadd.f32 %v902, %v903
      %v915 = vadd.f32 %v904, %v905
      %v916 = vadd.f32 %v910, %v911
      %v917 = vadd.f32 %v912, %v913
      %920 = vrot.lane.b32.xlu0 %v914, 64
      %v921 = vpop.permute.xlu0 %920
      %922 = vrot.lane.b32.xlu0 %v915, 64
      %v923 = vpop.permute.xlu0 %922
      %v926 = vadd.f32 %v914, %v921
      %v927 = vadd.f32 %v915, %v923
      %930 = vrot.lane.b32.xlu0 %v916, 64
      %v931 = vpop.permute.xlu0 %930
      %932 = vrot.lane.b32.xlu0 %v917, 64
      %v933 = vpop.permute.xlu0 %932
      %v936 = vadd.f32 %v916, %v931
      %v937 = vadd.f32 %v917, %v933
      %940 = vrot.lane.b32.xlu0 %v926, 96
      %v941 = vpop.permute.xlu0 %940
      %942 = vrot.lane.b32.xlu0 %v927, 96
      %v943 = vpop.permute.xlu0 %942
      %v946 = vadd.f32 %v926, %v941
      %v947 = vadd.f32 %v927, %v943
      %950 = vrot.lane.b32.xlu0 %v936, 96
      %v951 = vpop.permute.xlu0 %950
      %952 = vrot.lane.b32.xlu0 %v937, 96
      %v953 = vpop.permute.xlu0 %952
      %v956 = vadd.f32 %v936, %v951
      %v957 = vadd.f32 %v937, %v953
      %960 = vrot.lane.b32.xlu0 %v946, 112
      %v961 = vpop.permute.xlu0 %960
      %962 = vrot.lane.b32.xlu0 %v947, 112
      %v963 = vpop.permute.xlu0 %962
      %v966 = vadd.f32 %v946, %v961
      %v967 = vadd.f32 %v947, %v963
      %970 = vrot.lane.b32.xlu0 %v956, 112
      %v971 = vpop.permute.xlu0 %970
      %972 = vrot.lane.b32.xlu0 %v957, 112
      %v973 = vpop.permute.xlu0 %972
      %v976 = vadd.f32 %v956, %v971
      %v977 = vadd.f32 %v957, %v973
      %980 = vrot.lane.b32.xlu0 %v966, 120
      %v981 = vpop.permute.xlu0 %980
      %982 = vrot.lane.b32.xlu0 %v967, 120
      %v983 = vpop.permute.xlu0 %982
      %v986 = vadd.f32 %v966, %v981
      %v987 = vadd.f32 %v967, %v983
      %990 = vrot.lane.b32.xlu0 %v976, 120
      %v991 = vpop.permute.xlu0 %990
      %992 = vrot.lane.b32.xlu0 %v977, 120
      %v993 = vpop.permute.xlu0 %992
      %v996 = vadd.f32 %v976, %v991
      %v997 = vadd.f32 %v977, %v993
      %v998 = vmax.f32 %v996, 1.0
      %v999 = vmax.f32 %v997, 1.0
      %v1000 = vrcp.pop %v998
      %v1001 = vmul.f32 %v986, %v1000
      %v1002 = vrcp.pop %v999
      %v1003 = vmul.f32 %v987, %v1002
      %v1004 = vmul.f32 %v833, 2.0
      %v1005 = vmul.f32 %v834, 2.0
      %v1006 = vmul.f32 %v1001, 5.0
      %v1007 = vmul.f32 %v1003, 5.0
      %v1008 = vadd.f32 %v1004, %v1006
      %v1009 = vadd.f32 %v1005, %v1007
      %s1010 = scalar_lea.vmem %s123, 32
      %1011 = vst.msk [vmem:[%s1010] sm:$0xff] %vm411, %v1008
      %1012 = vst.msk [vmem:[%s1010 + $0x8] sm:$0xff] %vm411, %v1009
      %1015 = vrot.lane.b32.xlu0 %v877, 8
      %v1016 = vpop.permute.xlu0 %1015
      %1017 = vrot.lane.b32.xlu0 %v878, 8
      %v1018 = vpop.permute.xlu0 %1017
      %1021 = vst.msk [vmem:[%s1010] sm:$0xff] %vm422, %v1016
      %1022 = vst.msk [vmem:[%s1010 + $0x8] sm:$0xff] %vm422, %v1018
      %s1023 = scalar_lea.vmem %s116, 288
      %v1024 = vld [vmem:[%s1023] sm:$0xff]
      %v1025 = vld [vmem:[%s1023 + $0x8] sm:$0xff]
      %v1026 = vld [vmem:[%s1023 + $0x20] sm:$0xff]
      %v1027 = vld [vmem:[%s1023 + $0x28] sm:$0xff]
      %v1028 = vld [vmem:[%s1023 + $0x10] sm:$0xff]
      %v1029 = vld [vmem:[%s1023 + $0x30] sm:$0xff]
      %v1030 = vld [vmem:[%s1023 + $0x18] sm:$0xff]
      %v1031 = vld [vmem:[%s1023 + $0x38] sm:$0xff]
      %s1032 = scalar_lea.vmem %s1023, 64
      %v1033 = vld [vmem:[%s1032] ss:$8 sm:$0x3]
      %v1034 = vld [vmem:[%s1023 + $0x41] ss:$0 sm:$0xff]
      %v1035 = vld [vmem:[%s1023 + $0x42] ss:$0 sm:$0xff]
      %v1036 = vsel %vm137, %v1030, -inf
      %1037 = vmax.xlane.f32.xlu0 %v1036
      %v1038 = vpop.xlane.xlu0 %1037
      %v1039 = vsel %vm137, %v1031, -inf
      %1040 = vmax.xlane.f32.xlu0 %v1039
      %v1041 = vpop.xlane.xlu0 %1040
      %v1042 = vsub.f32 %v1030, %v1038
      %v1043 = vsub.f32 %v1031, %v1041
      %v1044 = vmul.f32 %v1042, 1.442695
      %v1045 = vpow.pop %v1044
      %v1046 = vmul.f32 %v1043, 1.442695
      %v1047 = vpow.pop %v1046
      %v1048 = vsel %vm137, %v1045, 0.0
      %1049 = vadd.xlane.f32.xlu0 %v1048
      %v1050 = vpop.xlane.xlu0 %1049
      %v1051 = vsel %vm137, %v1047, 0.0
      %1052 = vadd.xlane.f32.xlu0 %v1051
      %v1053 = vpop.xlane.xlu0 %1052
      %v1054 = vlog2.pop %v1050
      %v1055 = vmul.f32 %v1054, 0.6931472
      %v1056 = vlog2.pop %v1053
      %v1057 = vmul.f32 %v1056, 0.6931472
      %v1058 = vsub.f32 %v1042, %v1055
      %v1059 = vsub.f32 %v1043, %v1057
      %vm1060 = vcmp.eq.f32.partialorder %v1035, 0.0
      %v1061 = vsel %vm1060, 1, 0
      %vm1062 = vcmp.eq.s32.totalorder %v1061, 1
      %1064 = vset.pattern.permute.xlu0 0
      %1065 = vperm.xlu0 %1064, %v1058
      %v1066 = vpop.permute.xlu0 %1065
      %1069 = vset.pattern.permute.xlu0 0
      %1070 = vperm.xlu0 %1069, %v1059
      %v1071 = vpop.permute.xlu0 %1070
      %v1073 = vsel %vm1062, %v1066, 0.0
      %v1074 = vsel %vm1062, %v1071, 0.0
      %vm1075 = vcmp.eq.f32.partialorder %v1035, 1.0
      %v1076 = vsel %vm1075, 1, 0
      %vm1077 = vcmp.eq.s32.totalorder %v1076, 1
      %1078 = vset.pattern.permute.xlu0 1
      %1079 = vperm.xlu0 %1078, %v1058
      %v1080 = vpop.permute.xlu0 %1079
      %1082 = vset.pattern.permute.xlu0 1
      %1083 = vperm.xlu0 %1082, %v1059
      %v1084 = vpop.permute.xlu0 %1083
      %v1086 = vsel %vm1077, %v1080, 0.0
      %v1087 = vsel %vm1077, %v1084, 0.0
      %v1088 = vadd.f32 %v1073, %v1086
      %v1089 = vadd.f32 %v1074, %v1087
      %vm1090 = vcmp.eq.f32.partialorder %v1035, 2.0
      %v1091 = vsel %vm1090, 1, 0
      %vm1092 = vcmp.eq.s32.totalorder %v1091, 1
      %1093 = vset.pattern.permute.xlu0 2
      %1094 = vperm.xlu0 %1093, %v1058
      %v1095 = vpop.permute.xlu0 %1094
      %1097 = vset.pattern.permute.xlu0 2
      %1098 = vperm.xlu0 %1097, %v1059
      %v1099 = vpop.permute.xlu0 %1098
      %v1101 = vsel %vm1092, %v1095, 0.0
      %v1102 = vsel %vm1092, %v1099, 0.0
      %v1103 = vadd.f32 %v1088, %v1101
      %v1104 = vadd.f32 %v1089, %v1102
      %vm1105 = vcmp.eq.f32.partialorder %v1035, 3.0
      %v1106 = vsel %vm1105, 1, 0
      %vm1107 = vcmp.eq.s32.totalorder %v1106, 1
      %1108 = vset.pattern.permute.xlu0 3
      %1109 = vperm.xlu0 %1108, %v1058
      %v1110 = vpop.permute.xlu0 %1109
      %1112 = vset.pattern.permute.xlu0 3
      %1113 = vperm.xlu0 %1112, %v1059
      %v1114 = vpop.permute.xlu0 %1113
      %v1116 = vsel %vm1107, %v1110, 0.0
      %v1117 = vsel %vm1107, %v1114, 0.0
      %v1118 = vadd.f32 %v1103, %v1116
      %v1119 = vadd.f32 %v1104, %v1117
      %v1120 = vmul.f32 %v1118, 1.442695
      %v1121 = vpow.pop %v1120
      %v1122 = vmul.f32 %v1119, 1.442695
      %v1123 = vpow.pop %v1122
      %v1124 = vsel %vm1060, 0.25, 0.75
      %v1125 = vsub.f32 1.0, %v1121
      %v1126 = vsub.f32 1.0, %v1123
      %v1127 = vsub.f32 0.0, %v1124
      %v1128 = vmul.f32 %v1127, %v1125
      %v1129 = vmul.f32 %v1127, %v1126
      %v1130 = vmul.f32 %v1128, %v1125
      %v1131 = vmul.f32 %v1129, %v1126
      %v1132 = vmul.f32 %v1130, %v1118
      %v1133 = vmul.f32 %v1131, %v1119
      %v1134 = vsub.f32 %v1034, %v1028
      %v1135 = vsub.f32 %v1034, %v1029
      %v1136 = vand.u32 2147483647, %v1134
      %v1137 = vand.u32 2147483647, %v1135
      %1140 = vrot.lane.b32.xlu0 %v1136, 64
      %v1141 = vpop.permute.xlu0 %1140
      %1142 = vrot.lane.b32.xlu0 %v1137, 64
      %v1143 = vpop.permute.xlu0 %1142
      %v1146 = vadd.f32 %v1136, %v1141
      %v1147 = vadd.f32 %v1137, %v1143
      %1150 = vrot.lane.b32.xlu0 %v1146, 96
      %v1151 = vpop.permute.xlu0 %1150
      %1152 = vrot.lane.b32.xlu0 %v1147, 96
      %v1153 = vpop.permute.xlu0 %1152
      %v1156 = vadd.f32 %v1146, %v1151
      %v1157 = vadd.f32 %v1147, %v1153
      %1160 = vrot.lane.b32.xlu0 %v1156, 112
      %v1161 = vpop.permute.xlu0 %1160
      %1162 = vrot.lane.b32.xlu0 %v1157, 112
      %v1163 = vpop.permute.xlu0 %1162
      %v1166 = vadd.f32 %v1156, %v1161
      %v1167 = vadd.f32 %v1157, %v1163
      %1170 = vrot.lane.b32.xlu0 %v1166, 120
      %v1171 = vpop.permute.xlu0 %1170
      %1172 = vrot.lane.b32.xlu0 %v1167, 120
      %v1173 = vpop.permute.xlu0 %1172
      %v1176 = vadd.f32 %v1166, %v1171
      %v1177 = vadd.f32 %v1167, %v1173
      %v1179 = vlaneseq
      %v1180 = vshrl.u32 %v1179, 7
      %v1181 = vsub.s32 0, %v1180
      %v1182 = vrot.slane %v1033, %v1181
      %v1183 = vlaneseq
      %v1184 = vshrl.u32 %v1183, 7
      %v1185 = vsub.s32 1, %v1184
      %v1186 = vrot.slane %v1033, %v1185
      %v1189 = vsub.f32 %v1024, %v1182
      %v1190 = vsub.f32 %v1025, %v1186
      %v1191 = vsub.f32 %v1026, %v1182
      %v1192 = vsub.f32 %v1027, %v1186
      %vm1193 = vcmp.lt.f32.partialorder %v1189, 1.0
      %vm1194 = vcmp.lt.f32.partialorder %v1190, 1.0
      %vm1195 = vcmp.lt.f32.partialorder %v1191, 1.0
      %vm1196 = vcmp.lt.f32.partialorder %v1192, 1.0
      %v1197 = vand.u32 2147483647, %v1189
      %v1198 = vand.u32 2147483647, %v1190
      %v1199 = vand.u32 2147483647, %v1191
      %v1200 = vand.u32 2147483647, %v1192
      %v1201 = vsel %vm1193, %v1197, 0.0
      %v1202 = vsel %vm1194, %v1198, 0.0
      %v1203 = vsel %vm1195, %v1199, 0.0
      %v1204 = vsel %vm1196, %v1200, 0.0
      %v1205 = vsel %vm1193, 1, 0
      %v1206 = vsel %vm1194, 1, 0
      %v1207 = vsel %vm1195, 1, 0
      %v1208 = vsel %vm1196, 1, 0
      %v1209 = vcvt.s32.f32 %v1205
      %v1210 = vcvt.s32.f32 %v1206
      %v1211 = vcvt.s32.f32 %v1207
      %v1212 = vcvt.s32.f32 %v1208
      %v1213 = vadd.f32 %v1201, %v1202
      %v1214 = vadd.f32 %v1203, %v1204
      %v1215 = vadd.f32 %v1209, %v1210
      %v1216 = vadd.f32 %v1211, %v1212
      %1219 = vrot.lane.b32.xlu0 %v1213, 64
      %v1220 = vpop.permute.xlu0 %1219
      %1221 = vrot.lane.b32.xlu0 %v1214, 64
      %v1222 = vpop.permute.xlu0 %1221
      %v1225 = vadd.f32 %v1213, %v1220
      %v1226 = vadd.f32 %v1214, %v1222
      %1229 = vrot.lane.b32.xlu0 %v1215, 64
      %v1230 = vpop.permute.xlu0 %1229
      %1231 = vrot.lane.b32.xlu0 %v1216, 64
      %v1232 = vpop.permute.xlu0 %1231
      %v1235 = vadd.f32 %v1215, %v1230
      %v1236 = vadd.f32 %v1216, %v1232
      %1239 = vrot.lane.b32.xlu0 %v1225, 96
      %v1240 = vpop.permute.xlu0 %1239
      %1241 = vrot.lane.b32.xlu0 %v1226, 96
      %v1242 = vpop.permute.xlu0 %1241
      %v1245 = vadd.f32 %v1225, %v1240
      %v1246 = vadd.f32 %v1226, %v1242
      %1249 = vrot.lane.b32.xlu0 %v1235, 96
      %v1250 = vpop.permute.xlu0 %1249
      %1251 = vrot.lane.b32.xlu0 %v1236, 96
      %v1252 = vpop.permute.xlu0 %1251
      %v1255 = vadd.f32 %v1235, %v1250
      %v1256 = vadd.f32 %v1236, %v1252
      %1259 = vrot.lane.b32.xlu0 %v1245, 112
      %v1260 = vpop.permute.xlu0 %1259
      %1261 = vrot.lane.b32.xlu0 %v1246, 112
      %v1262 = vpop.permute.xlu0 %1261
      %v1265 = vadd.f32 %v1245, %v1260
      %v1266 = vadd.f32 %v1246, %v1262
      %1269 = vrot.lane.b32.xlu0 %v1255, 112
      %v1270 = vpop.permute.xlu0 %1269
      %1271 = vrot.lane.b32.xlu0 %v1256, 112
      %v1272 = vpop.permute.xlu0 %1271
      %v1275 = vadd.f32 %v1255, %v1270
      %v1276 = vadd.f32 %v1256, %v1272
      %1279 = vrot.lane.b32.xlu0 %v1265, 120
      %v1280 = vpop.permute.xlu0 %1279
      %1281 = vrot.lane.b32.xlu0 %v1266, 120
      %v1282 = vpop.permute.xlu0 %1281
      %v1285 = vadd.f32 %v1265, %v1280
      %v1286 = vadd.f32 %v1266, %v1282
      %1289 = vrot.lane.b32.xlu0 %v1275, 120
      %v1290 = vpop.permute.xlu0 %1289
      %1291 = vrot.lane.b32.xlu0 %v1276, 120
      %v1292 = vpop.permute.xlu0 %1291
      %v1295 = vadd.f32 %v1275, %v1290
      %v1296 = vadd.f32 %v1276, %v1292
      %v1297 = vmax.f32 %v1295, 1.0
      %v1298 = vmax.f32 %v1296, 1.0
      %v1299 = vrcp.pop %v1297
      %v1300 = vmul.f32 %v1285, %v1299
      %v1301 = vrcp.pop %v1298
      %v1302 = vmul.f32 %v1286, %v1301
      %v1303 = vmul.f32 %v1132, 2.0
      %v1304 = vmul.f32 %v1133, 2.0
      %v1305 = vmul.f32 %v1300, 5.0
      %v1306 = vmul.f32 %v1302, 5.0
      %v1307 = vadd.f32 %v1303, %v1305
      %v1308 = vadd.f32 %v1304, %v1306
      %s1309 = scalar_lea.vmem %s123, 48
      %1310 = vst.msk [vmem:[%s1309] sm:$0xff] %vm411, %v1307
      %1311 = vst.msk [vmem:[%s1309 + $0x8] sm:$0xff] %vm411, %v1308
      %1314 = vrot.lane.b32.xlu0 %v1176, 8
      %v1315 = vpop.permute.xlu0 %1314
      %1316 = vrot.lane.b32.xlu0 %v1177, 8
      %v1317 = vpop.permute.xlu0 %1316
      %1320 = vst.msk [vmem:[%s1309] sm:$0xff] %vm422, %v1315
      %1321 = vst.msk [vmem:[%s1309 + $0x8] sm:$0xff] %vm422, %v1317
      %s1322 = smul.u32 4, %s12
      %p1323 = scmp.lt.s32.totalorder %s1322, 7
      %s1324 = scalar_select %p1323, %s1322, 7
      %s1325 = smul.addr %s1324, 2
      %s1326 = smul.addr %s1325, 8
      %s1327 = scalar_lea.vmem %s1, %s1326
      // Predicated region
      $region25: #{compute_cost_matrices.1} parent=23 // pred_check
        %p1328 = pneg %p56
      $region26: #{compute_cost_matrices.1} parent=23 // pred_check_branch
        %1330 = sbr.rel (%p1328) target = $region28
      $region27: #{compute_cost_matrices.1} parent=23 // pred_region
        %s1331 = smul.u32 4, %s12
      $region28: #{compute_cost_matrices.1} parent=23 // pred_fallthru
        _
    $region24: #{compute_cost_matrices.1} parent=5 // pred_fallthru
      _
    %p1332 = scmp.le.s32.totalorder 2, %s7
    // Predicated region
    $region29: #{compute_cost_matrices.1} parent=5 // pred_check
      %p1333 = pneg %p1332
    $region30: #{compute_cost_matrices.1} parent=5 // pred_check_branch
      %1335 = sbr.rel (%p1333) target = $region32
    $region31: #{compute_cost_matrices.1} parent=5 // pred_region
      %s1336 = ssub.s32 %s7, 2
      // Predicated region
      $region33: #{compute_cost_matrices.1} parent=31 // pred_check
        %p1337 = pneg %p62
      $region34: #{compute_cost_matrices.1} parent=31 // pred_check_branch
        %1339 = sbr.rel (%p1337) target = $region36
      $region35: #{compute_cost_matrices.1} parent=31 // pred_region
        %s1340 = smul.u32 4, %s13
        %p1341 = scmp.lt.s32.totalorder %s1340, 7
        %s1342 = scalar_select %p1341, %s1340, 7
        %s1343 = smul.addr %s1342, 2
        %s1344 = smul.addr %s1343, 8
        %s1345 = scalar_lea.vmem %s1, %s1344
      $region36: #{compute_cost_matrices.1} parent=31 // pred_fallthru
        _
    $region32: #{compute_cost_matrices.1} parent=5 // pred_fallthru
      _
  $region6: #{compute_cost_matrices.1} parent=0 // loop_footer
    %s11 = sadd.s32 1, %s7
  $region7: #{compute_cost_matrices.1} parent=0 // loop_footer_branch
    %6 = sbr.rel target = $region3
  $region8: #{compute_cost_matrices.1} parent=0 // loop_exit
    _

</llo_original>
